<compile_context>
chip_gen: v7x
topology: tpu7x:2x2x1
jax: 0.10.0
libtpu: 0.0.40
codegen_flags: <defaults>
</compile_context>

<pallas_src>
import functools

import jax
import jax.numpy as jnp
from jax import lax
from jax.experimental import pallas as pl
from jax.experimental.pallas import tpu as pltpu


# ----------------------------------------------------------------------------
# One-time parameter preparation (PyTorch layout -> kernel-ready layout)
# ----------------------------------------------------------------------------
def prepare_kernel_params(params):
    C1 = params["w_conv1"].shape[0]
    C2 = params["w_conv2"].shape[0]
    H, F = params["w_fc1"].shape
    NC = params["w_fc2"].shape[0]
    Lq = F // C2                        # spatial length after both pools
    NCP = ((NC + 127) // 128) * 128     # lane-dense logits slab width

    return {
        # conv taps as (K, Cin, Cout): w[k] is a ready (Cin, Cout) matmul operand
        "w1": jnp.transpose(params["w_conv1"], (2, 1, 0)),                    # (3, 1, C1)
        "b1": params["b_conv1"].reshape(1, C1),
        "w2": jnp.transpose(params["w_conv2"], (2, 1, 0)),                    # (3, C1, C2)
        "b2": params["b_conv2"].reshape(1, C2),
        # fc1 weight with PyTorch's channel-major flatten folded in:
        #   wf1[j, c, o] = W_fc1[o, c * Lq + j]
        "wf1": jnp.transpose(params["w_fc1"].reshape(H, C2, Lq), (2, 1, 0)),  # (Lq, C2, H)
        "bf1": params["b_fc1"].reshape(1, H),
        # fc2 zero-padded to a lane-dense (>=128 wide) output slab
        "wf2": jnp.pad(params["w_fc2"].T, ((0, 0), (0, NCP - NC))),           # (H, NCP)
        "bf2": jnp.pad(params["b_fc2"].reshape(1, NC), ((0, 0), (0, NCP - NC))),
    }


# ----------------------------------------------------------------------------
# Fused forward pass (single pallas_call, no grid, everything in VMEM)
# ----------------------------------------------------------------------------
@functools.partial(jax.jit, static_argnames=("num_classes",))
def simple_cnn_forward(x, kp, num_classes):
    """x: (B, 1, num_features) float32 (PyTorch NCW layout)."""
    B, Cin, L = x.shape
    assert Cin == 1 and L % 4 == 0
    Lh, Lq = L // 2, L // 4
    N, Nh, Nq = B * L, B * Lh, B * Lq
    NCP = kp["wf2"].shape[1]
    assert kp["wf1"].shape[0] == Lq, "num_features inconsistent with fc1 weight"
    f32 = jnp.float32

    def kernel(x_ref, w1_ref, b1_ref, w2_ref, b2_ref,
               wf1_ref, bf1_ref, wf2_ref, bf2_ref, o_ref):
        dot = functools.partial(jnp.dot, preferred_element_type=f32)

        def col_iota(n):
            return lax.broadcasted_iota(jnp.int32, (n, 1), 0)

        # (n,1) masks that zero the first / last row of every length-`seg`
        # batch segment (realize Conv1d's zero padding after a sublane roll).
        def not_first(n, seg):
            r = col_iota(n)
            hit = (r == 0)
            for s in range(seg, n, seg):
                hit = jnp.logical_or(hit, r == s)
            return jnp.logical_not(hit).astype(f32)

        def not_last(n, seg):
            r = col_iota(n)
            hit = (r == seg - 1)
            for s in range(seg, n, seg):
                hit = jnp.logical_or(hit, r == s + seg - 1)
            return jnp.logical_not(hit).astype(f32)

        # E[s, 2s] = 1  -> picks the even rows (the per-window maxima).
        def even_rows(n_out, n_in):
            r = lax.broadcasted_iota(jnp.int32, (n_out, n_in), 0)
            c = lax.broadcasted_iota(jnp.int32, (n_out, n_in), 1)
            return (c == 2 * r).astype(f32)

        xcol = x_ref[...]                                    # (N, 1) position-major input

        # ---- conv1 (Cin=1, pad=1) + bias + ReLU --------------------------------
        t0 = xcol * w1_ref[0]                                # tap k=0 weights, (N, C1)
        t1 = xcol * w1_ref[1]                                # tap k=1
        t2 = xcol * w1_ref[2]                                # tap k=2
        y1 = (not_first(N, L) * pltpu.roll(t0, shift=1, axis=0)      # sees x[l-1]
              + t1                                                    # sees x[l]
              + not_last(N, L) * pltpu.roll(t2, shift=N - 1, axis=0)  # sees x[l+1]
              + b1_ref[...])
        h1 = jnp.maximum(y1, 0.0)                            # (N, C1)

        # ---- maxpool1 (kernel=2, stride=2): max with next row, keep even rows --
        hp1 = jnp.maximum(h1, pltpu.roll(h1, shift=N - 1, axis=0))
        z1 = dot(even_rows(Nh, N), hp1)                      # (Nh, C1)

        # ---- conv2 (pad=1) + bias + ReLU ---------------------------------------
        zm = not_first(Nh, Lh) * pltpu.roll(z1, shift=1, axis=0)
        zp = not_last(Nh, Lh) * pltpu.roll(z1, shift=Nh - 1, axis=0)
        y2 = (dot(zm, w2_ref[0]) + dot(z1, w2_ref[1]) + dot(zp, w2_ref[2])
              + b2_ref[...])
        h2 = jnp.maximum(y2, 0.0)                            # (Nh, C2)

        # ---- maxpool2 ----------------------------------------------------------
        hp2 = jnp.maximum(h2, pltpu.roll(h2, shift=Nh - 1, axis=0))
        z2 = dot(even_rows(Nq, Nh), hp2)                     # (Nq, C2)

        # ---- flatten (channel-major view folded into wf1) + fc1 + ReLU ---------
        rb = lax.broadcasted_iota(jnp.int32, (B, Nq), 0)
        cb = lax.broadcasted_iota(jnp.int32, (B, Nq), 1)
        acc = None
        for j in range(Lq):                                  # static unroll (Lq small)
            sel_j = (cb == rb * Lq + j).astype(f32)          # pick row b*Lq+j per batch
            part = dot(dot(sel_j, z2), wf1_ref[j])           # (B, H)
            acc = part if acc is None else acc + part
        hfc = jnp.maximum(acc + bf1_ref[...], 0.0)           # (B, H)

        # ---- fc2: lane-dense 128-wide logits slab ------------------------------
        o_ref[...] = dot(hfc, wf2_ref[...]) + bf2_ref[...]

    vmem = pl.BlockSpec(memory_space=pltpu.MemorySpace.VMEM)
    out_padded = pl.pallas_call(
        kernel,
        out_shape=jax.ShapeDtypeStruct((B, NCP), jnp.float32),
        in_specs=[vmem] * 9,
        out_specs=vmem,
    )(x.reshape(B * L, 1), kp["w1"], kp["b1"], kp["w2"], kp["b2"],
      kp["wf1"], kp["bf1"], kp["wf2"], kp["bf2"])
    return out_padded[:, :num_classes]


# ----------------------------------------------------------------------------
# Pure-JAX reference (mirrors the PyTorch forward exactly)
# ----------------------------------------------------------------------------
def reference_forward(x, params):
    def conv1d(x, w, b):
        y = lax.conv_general_dilated(
            x, w, window_strides=(1,), padding=((1, 1),),
            dimension_numbers=("NCH", "OIH", "NCH"),
            precision=lax.Precision.HIGHEST)
        return y + b[None, :, None]

    def pool(y):  # MaxPool1d(kernel=2, stride=2)
        B, C, L = y.shape
        return jnp.max(y.reshape(B, C, L // 2, 2), axis=-1)

    y = pool(jnp.maximum(conv1d(x, params["w_conv1"], params["b_conv1"]), 0.0))
    y = pool(jnp.maximum(conv1d(y, params["w_conv2"], params["b_conv2"]), 0.0))
    y = y.reshape(y.shape[0], -1)
    h = jnp.maximum(y @ params["w_fc1"].T + params["b_fc1"], 0.0)
    return h @ params["w_fc2"].T + params["b_fc2"]


# ----------------------------------------------------------------------------
# Main
# ----------------------------------------------------------------------------
if __name__ == "__main__":
    B = 2
    num_features = 16
    num_classes = 8

    key = jax.random.PRNGKey(0)
    ks = jax.random.split(key, 9)
    fc_in = 32 * (num_features // 4)

    params = {
        "w_conv1": 0.1 * jax.random.normal(ks[0], (16, 1, 3), jnp.float32),
        "b_conv1": 0.1 * jax.random.normal(ks[1], (16,), jnp.float32),
        "w_conv2": 0.1 * jax.random.normal(ks[2], (32, 16, 3), jnp.float32),
        "b_conv2": 0.1 * jax.random.normal(ks[3], (32,), jnp.float32),
        "w_fc1": 0.1 * jax.random.normal(ks[4], (128, fc_in), jnp.float32),
        "b_fc1": 0.1 * jax.random.normal(ks[5], (128,), jnp.float32),
        "w_fc2": 0.1 * jax.random.normal(ks[6], (num_classes, 128), jnp.float32),
        "b_fc2": 0.1 * jax.random.normal(ks[7], (num_classes,), jnp.float32),
    }
    x = jax.random.normal(ks[8], (B, 1, num_features), jnp.float32)

    kparams = prepare_kernel_params(params)          # one-time weight re-layout

    out = jax.block_until_ready(
        simple_cnn_forward(x, kparams, num_classes=num_classes))
    ref = jax.block_until_ready(reference_forward(x, params))

    assert out.shape == (B, num_classes), out.shape
    # Tolerance allows for default (non-HIGHEST) MXU matmul precision in-kernel.
    assert jnp.allclose(out, ref, atol=3e-3, rtol=3e-3), (out, ref)

    print("KERNEL_OK")
</pallas_src>

<mosaic_0001>
module attributes {stable_mosaic.version = 11 : i64} {
  func.func @kernel(%arg0: memref<32x1xf32, #tpu.memory_space<vmem>>, %arg1: memref<3x1x16xf32, #tpu.memory_space<vmem>>, %arg2: memref<1x16xf32, #tpu.memory_space<vmem>>, %arg3: memref<3x16x32xf32, #tpu.memory_space<vmem>>, %arg4: memref<1x32xf32, #tpu.memory_space<vmem>>, %arg5: memref<4x32x128xf32, #tpu.memory_space<vmem>>, %arg6: memref<1x128xf32, #tpu.memory_space<vmem>>, %arg7: memref<128x128xf32, #tpu.memory_space<vmem>>, %arg8: memref<1x128xf32, #tpu.memory_space<vmem>>, %arg9: memref<2x128xf32, #tpu.memory_space<vmem>>) attributes {dimension_semantics = [], scalar_prefetch = 0 : i64, scratch_operands = 0 : i64, tpu.core_type = #tpu.core_type<tc>} {
    %c0 = arith.constant 0 : index
    %c0_0 = arith.constant 0 : index
    %0 = vector.load %arg0[%c0, %c0_0] : memref<32x1xf32, #tpu.memory_space<vmem>>, vector<32x1xf32>
    %c0_1 = arith.constant 0 : index
    %c0_2 = arith.constant 0 : index
    %c0_3 = arith.constant 0 : index
    %1 = vector.load %arg1[%c0_1, %c0_2, %c0_3] : memref<3x1x16xf32, #tpu.memory_space<vmem>>, vector<1x1x16xf32>
    %2 = vector.shape_cast %1 : vector<1x1x16xf32> to vector<1x16xf32>
    %3 = vector.broadcast %0 : vector<32x1xf32> to vector<32x16xf32>
    %4 = vector.broadcast %2 : vector<1x16xf32> to vector<32x16xf32>
    %5 = arith.mulf %3, %4 : vector<32x16xf32>
    %c1 = arith.constant 1 : index
    %c0_4 = arith.constant 0 : index
    %c0_5 = arith.constant 0 : index
    %6 = vector.load %arg1[%c1, %c0_4, %c0_5] : memref<3x1x16xf32, #tpu.memory_space<vmem>>, vector<1x1x16xf32>
    %7 = vector.shape_cast %6 : vector<1x1x16xf32> to vector<1x16xf32>
    %8 = vector.broadcast %0 : vector<32x1xf32> to vector<32x16xf32>
    %9 = vector.broadcast %7 : vector<1x16xf32> to vector<32x16xf32>
    %10 = arith.mulf %8, %9 : vector<32x16xf32>
    %c2 = arith.constant 2 : index
    %c0_6 = arith.constant 0 : index
    %c0_7 = arith.constant 0 : index
    %11 = vector.load %arg1[%c2, %c0_6, %c0_7] : memref<3x1x16xf32, #tpu.memory_space<vmem>>, vector<1x1x16xf32>
    %12 = vector.shape_cast %11 : vector<1x1x16xf32> to vector<1x16xf32>
    %13 = vector.broadcast %0 : vector<32x1xf32> to vector<32x16xf32>
    %14 = vector.broadcast %12 : vector<1x16xf32> to vector<32x16xf32>
    %15 = arith.mulf %13, %14 : vector<32x16xf32>
    %16 = tpu.iota {dimensions = array<i32: 0>} : vector<32x1xi32>
    %c0_i32 = arith.constant 0 : i32
    %17 = vector.broadcast %c0_i32 : i32 to vector<32x1xi32>
    %18 = arith.cmpi eq, %16, %17 : vector<32x1xi32>
    %c16_i32 = arith.constant 16 : i32
    %19 = vector.broadcast %c16_i32 : i32 to vector<32x1xi32>
    %20 = arith.cmpi eq, %16, %19 : vector<32x1xi32>
    %21 = arith.ori %18, %20 : vector<32x1xi1>
    %cst = arith.constant dense<true> : vector<32x1xi1>
    %22 = arith.xori %21, %cst : vector<32x1xi1>
    %23 = arith.extui %22 : vector<32x1xi1> to vector<32x1xi32>
    %24 = arith.sitofp %23 : vector<32x1xi32> to vector<32x1xf32>
    %c1_i32 = arith.constant 1 : i32
    %25 = tpu.dynamic_rotate %5 by %c1_i32 dim 0 : vector<32x16xf32>, i32 -> vector<32x16xf32>
    %26 = vector.broadcast %24 : vector<32x1xf32> to vector<32x16xf32>
    %27 = arith.mulf %26, %25 : vector<32x16xf32>
    %28 = arith.addf %27, %10 : vector<32x16xf32>
    %29 = tpu.iota {dimensions = array<i32: 0>} : vector<32x1xi32>
    %c15_i32 = arith.constant 15 : i32
    %30 = vector.broadcast %c15_i32 : i32 to vector<32x1xi32>
    %31 = arith.cmpi eq, %29, %30 : vector<32x1xi32>
    %c31_i32 = arith.constant 31 : i32
    %32 = vector.broadcast %c31_i32 : i32 to vector<32x1xi32>
    %33 = arith.cmpi eq, %29, %32 : vector<32x1xi32>
    %34 = arith.ori %31, %33 : vector<32x1xi1>
    %cst_8 = arith.constant dense<true> : vector<32x1xi1>
    %35 = arith.xori %34, %cst_8 : vector<32x1xi1>
    %36 = arith.extui %35 : vector<32x1xi1> to vector<32x1xi32>
    %37 = arith.sitofp %36 : vector<32x1xi32> to vector<32x1xf32>
    %c31_i32_9 = arith.constant 31 : i32
    %38 = tpu.dynamic_rotate %15 by %c31_i32_9 dim 0 : vector<32x16xf32>, i32 -> vector<32x16xf32>
    %39 = vector.broadcast %37 : vector<32x1xf32> to vector<32x16xf32>
    %40 = arith.mulf %39, %38 : vector<32x16xf32>
    %41 = arith.addf %28, %40 : vector<32x16xf32>
    %c0_10 = arith.constant 0 : index
    %c0_11 = arith.constant 0 : index
    %42 = vector.load %arg2[%c0_10, %c0_11] : memref<1x16xf32, #tpu.memory_space<vmem>>, vector<1x16xf32>
    %43 = vector.broadcast %42 : vector<1x16xf32> to vector<32x16xf32>
    %44 = arith.addf %41, %43 : vector<32x16xf32>
    %cst_12 = arith.constant 0.000000e+00 : f32
    %45 = vector.broadcast %cst_12 : f32 to vector<32x16xf32>
    %46 = arith.maximumf %44, %45 : vector<32x16xf32>
    %c31_i32_13 = arith.constant 31 : i32
    %47 = tpu.dynamic_rotate %46 by %c31_i32_13 dim 0 : vector<32x16xf32>, i32 -> vector<32x16xf32>
    %48 = arith.maximumf %46, %47 : vector<32x16xf32>
    %49 = tpu.iota {dimensions = array<i32: 0>} : vector<16x32xi32>
    %50 = tpu.iota {dimensions = array<i32: 1>} : vector<16x32xi32>
    %c2_i32 = arith.constant 2 : i32
    %51 = vector.broadcast %c2_i32 : i32 to vector<16x32xi32>
    %52 = arith.muli %51, %49 : vector<16x32xi32>
    %53 = arith.cmpi eq, %50, %52 : vector<16x32xi32>
    %54 = arith.extui %53 : vector<16x32xi1> to vector<16x32xi32>
    %55 = arith.sitofp %54 : vector<16x32xi32> to vector<16x32xf32>
    %cst_14 = arith.constant dense<0.000000e+00> : vector<16x16xf32>
    %56 = tpu.matmul %55, %48, %cst_14 {dimension_numbers = #tpu.dot_dimension_numbers<[1], [0], [0], [1], [0, 0, 1, 1], [], []>} : vector<16x32xf32>, vector<32x16xf32>, vector<16x16xf32> -> vector<16x16xf32>
    %57 = tpu.iota {dimensions = array<i32: 0>} : vector<16x1xi32>
    %c0_i32_15 = arith.constant 0 : i32
    %58 = vector.broadcast %c0_i32_15 : i32 to vector<16x1xi32>
    %59 = arith.cmpi eq, %57, %58 : vector<16x1xi32>
    %c8_i32 = arith.constant 8 : i32
    %60 = vector.broadcast %c8_i32 : i32 to vector<16x1xi32>
    %61 = arith.cmpi eq, %57, %60 : vector<16x1xi32>
    %62 = arith.ori %59, %61 : vector<16x1xi1>
    %cst_16 = arith.constant dense<true> : vector<16x1xi1>
    %63 = arith.xori %62, %cst_16 : vector<16x1xi1>
    %64 = arith.extui %63 : vector<16x1xi1> to vector<16x1xi32>
    %65 = arith.sitofp %64 : vector<16x1xi32> to vector<16x1xf32>
    %c1_i32_17 = arith.constant 1 : i32
    %66 = tpu.dynamic_rotate %56 by %c1_i32_17 dim 0 : vector<16x16xf32>, i32 -> vector<16x16xf32>
    %67 = vector.broadcast %65 : vector<16x1xf32> to vector<16x16xf32>
    %68 = arith.mulf %67, %66 : vector<16x16xf32>
    %69 = tpu.iota {dimensions = array<i32: 0>} : vector<16x1xi32>
    %c7_i32 = arith.constant 7 : i32
    %70 = vector.broadcast %c7_i32 : i32 to vector<16x1xi32>
    %71 = arith.cmpi eq, %69, %70 : vector<16x1xi32>
    %c15_i32_18 = arith.constant 15 : i32
    %72 = vector.broadcast %c15_i32_18 : i32 to vector<16x1xi32>
    %73 = arith.cmpi eq, %69, %72 : vector<16x1xi32>
    %74 = arith.ori %71, %73 : vector<16x1xi1>
    %cst_19 = arith.constant dense<true> : vector<16x1xi1>
    %75 = arith.xori %74, %cst_19 : vector<16x1xi1>
    %76 = arith.extui %75 : vector<16x1xi1> to vector<16x1xi32>
    %77 = arith.sitofp %76 : vector<16x1xi32> to vector<16x1xf32>
    %c15_i32_20 = arith.constant 15 : i32
    %78 = tpu.dynamic_rotate %56 by %c15_i32_20 dim 0 : vector<16x16xf32>, i32 -> vector<16x16xf32>
    %79 = vector.broadcast %77 : vector<16x1xf32> to vector<16x16xf32>
    %80 = arith.mulf %79, %78 : vector<16x16xf32>
    %c0_21 = arith.constant 0 : index
    %c0_22 = arith.constant 0 : index
    %c0_23 = arith.constant 0 : index
    %81 = vector.load %arg3[%c0_21, %c0_22, %c0_23] : memref<3x16x32xf32, #tpu.memory_space<vmem>>, vector<1x16x32xf32>
    %82 = vector.shape_cast %81 : vector<1x16x32xf32> to vector<16x32xf32>
    %cst_24 = arith.constant dense<0.000000e+00> : vector<16x32xf32>
    %83 = tpu.matmul %68, %82, %cst_24 {dimension_numbers = #tpu.dot_dimension_numbers<[1], [0], [0], [1], [0, 0, 1, 1], [], []>} : vector<16x16xf32>, vector<16x32xf32>, vector<16x32xf32> -> vector<16x32xf32>
    %c1_25 = arith.constant 1 : index
    %c0_26 = arith.constant 0 : index
    %c0_27 = arith.constant 0 : index
    %84 = vector.load %arg3[%c1_25, %c0_26, %c0_27] : memref<3x16x32xf32, #tpu.memory_space<vmem>>, vector<1x16x32xf32>
    %85 = vector.shape_cast %84 : vector<1x16x32xf32> to vector<16x32xf32>
    %cst_28 = arith.constant dense<0.000000e+00> : vector<16x32xf32>
    %86 = tpu.matmul %56, %85, %cst_28 {dimension_numbers = #tpu.dot_dimension_numbers<[1], [0], [0], [1], [0, 0, 1, 1], [], []>} : vector<16x16xf32>, vector<16x32xf32>, vector<16x32xf32> -> vector<16x32xf32>
    %87 = arith.addf %83, %86 : vector<16x32xf32>
    %c2_29 = arith.constant 2 : index
    %c0_30 = arith.constant 0 : index
    %c0_31 = arith.constant 0 : index
    %88 = vector.load %arg3[%c2_29, %c0_30, %c0_31] : memref<3x16x32xf32, #tpu.memory_space<vmem>>, vector<1x16x32xf32>
    %89 = vector.shape_cast %88 : vector<1x16x32xf32> to vector<16x32xf32>
    %cst_32 = arith.constant dense<0.000000e+00> : vector<16x32xf32>
    %90 = tpu.matmul %80, %89, %cst_32 {dimension_numbers = #tpu.dot_dimension_numbers<[1], [0], [0], [1], [0, 0, 1, 1], [], []>} : vector<16x16xf32>, vector<16x32xf32>, vector<16x32xf32> -> vector<16x32xf32>
    %91 = arith.addf %87, %90 : vector<16x32xf32>
    %c0_33 = arith.constant 0 : index
    %c0_34 = arith.constant 0 : index
    %92 = vector.load %arg4[%c0_33, %c0_34] : memref<1x32xf32, #tpu.memory_space<vmem>>, vector<1x32xf32>
    %93 = vector.broadcast %92 : vector<1x32xf32> to vector<16x32xf32>
    %94 = arith.addf %91, %93 : vector<16x32xf32>
    %cst_35 = arith.constant 0.000000e+00 : f32
    %95 = vector.broadcast %cst_35 : f32 to vector<16x32xf32>
    %96 = arith.maximumf %94, %95 : vector<16x32xf32>
    %c15_i32_36 = arith.constant 15 : i32
    %97 = tpu.dynamic_rotate %96 by %c15_i32_36 dim 0 : vector<16x32xf32>, i32 -> vector<16x32xf32>
    %98 = arith.maximumf %96, %97 : vector<16x32xf32>
    %99 = tpu.iota {dimensions = array<i32: 0>} : vector<8x16xi32>
    %100 = tpu.iota {dimensions = array<i32: 1>} : vector<8x16xi32>
    %c2_i32_37 = arith.constant 2 : i32
    %101 = vector.broadcast %c2_i32_37 : i32 to vector<8x16xi32>
    %102 = arith.muli %101, %99 : vector<8x16xi32>
    %103 = arith.cmpi eq, %100, %102 : vector<8x16xi32>
    %104 = arith.extui %103 : vector<8x16xi1> to vector<8x16xi32>
    %105 = arith.sitofp %104 : vector<8x16xi32> to vector<8x16xf32>
    %cst_38 = arith.constant dense<0.000000e+00> : vector<8x32xf32>
    %106 = tpu.matmul %105, %98, %cst_38 {dimension_numbers = #tpu.dot_dimension_numbers<[1], [0], [0], [1], [0, 0, 1, 1], [], []>} : vector<8x16xf32>, vector<16x32xf32>, vector<8x32xf32> -> vector<8x32xf32>
    %107 = tpu.iota {dimensions = array<i32: 0>} : vector<2x8xi32>
    %108 = tpu.iota {dimensions = array<i32: 1>} : vector<2x8xi32>
    %c4_i32 = arith.constant 4 : i32
    %109 = vector.broadcast %c4_i32 : i32 to vector<2x8xi32>
    %110 = arith.muli %107, %109 : vector<2x8xi32>
    %c0_i32_39 = arith.constant 0 : i32
    %111 = vector.broadcast %c0_i32_39 : i32 to vector<2x8xi32>
    %112 = arith.addi %110, %111 : vector<2x8xi32>
    %113 = arith.cmpi eq, %108, %112 : vector<2x8xi32>
    %114 = arith.extui %113 : vector<2x8xi1> to vector<2x8xi32>
    %115 = arith.sitofp %114 : vector<2x8xi32> to vector<2x8xf32>
    %cst_40 = arith.constant dense<0.000000e+00> : vector<2x32xf32>
    %116 = tpu.matmul %115, %106, %cst_40 {dimension_numbers = #tpu.dot_dimension_numbers<[1], [0], [0], [1], [0, 0, 1, 1], [], []>} : vector<2x8xf32>, vector<8x32xf32>, vector<2x32xf32> -> vector<2x32xf32>
    %c0_41 = arith.constant 0 : index
    %c0_42 = arith.constant 0 : index
    %c0_43 = arith.constant 0 : index
    %117 = vector.load %arg5[%c0_41, %c0_42, %c0_43] : memref<4x32x128xf32, #tpu.memory_space<vmem>>, vector<1x32x128xf32>
    %118 = vector.shape_cast %117 : vector<1x32x128xf32> to vector<32x128xf32>
    %cst_44 = arith.constant dense<0.000000e+00> : vector<2x128xf32>
    %119 = tpu.matmul %116, %118, %cst_44 {dimension_numbers = #tpu.dot_dimension_numbers<[1], [0], [0], [1], [0, 0, 1, 1], [], []>} : vector<2x32xf32>, vector<32x128xf32>, vector<2x128xf32> -> vector<2x128xf32>
    %c4_i32_45 = arith.constant 4 : i32
    %120 = vector.broadcast %c4_i32_45 : i32 to vector<2x8xi32>
    %121 = arith.muli %107, %120 : vector<2x8xi32>
    %c1_i32_46 = arith.constant 1 : i32
    %122 = vector.broadcast %c1_i32_46 : i32 to vector<2x8xi32>
    %123 = arith.addi %121, %122 : vector<2x8xi32>
    %124 = arith.cmpi eq, %108, %123 : vector<2x8xi32>
    %125 = arith.extui %124 : vector<2x8xi1> to vector<2x8xi32>
    %126 = arith.sitofp %125 : vector<2x8xi32> to vector<2x8xf32>
    %cst_47 = arith.constant dense<0.000000e+00> : vector<2x32xf32>
    %127 = tpu.matmul %126, %106, %cst_47 {dimension_numbers = #tpu.dot_dimension_numbers<[1], [0], [0], [1], [0, 0, 1, 1], [], []>} : vector<2x8xf32>, vector<8x32xf32>, vector<2x32xf32> -> vector<2x32xf32>
    %c1_48 = arith.constant 1 : index
    %c0_49 = arith.constant 0 : index
    %c0_50 = arith.constant 0 : index
    %128 = vector.load %arg5[%c1_48, %c0_49, %c0_50] : memref<4x32x128xf32, #tpu.memory_space<vmem>>, vector<1x32x128xf32>
    %129 = vector.shape_cast %128 : vector<1x32x128xf32> to vector<32x128xf32>
    %cst_51 = arith.constant dense<0.000000e+00> : vector<2x128xf32>
    %130 = tpu.matmul %127, %129, %cst_51 {dimension_numbers = #tpu.dot_dimension_numbers<[1], [0], [0], [1], [0, 0, 1, 1], [], []>} : vector<2x32xf32>, vector<32x128xf32>, vector<2x128xf32> -> vector<2x128xf32>
    %131 = arith.addf %119, %130 : vector<2x128xf32>
    %c4_i32_52 = arith.constant 4 : i32
    %132 = vector.broadcast %c4_i32_52 : i32 to vector<2x8xi32>
    %133 = arith.muli %107, %132 : vector<2x8xi32>
    %c2_i32_53 = arith.constant 2 : i32
    %134 = vector.broadcast %c2_i32_53 : i32 to vector<2x8xi32>
    %135 = arith.addi %133, %134 : vector<2x8xi32>
    %136 = arith.cmpi eq, %108, %135 : vector<2x8xi32>
    %137 = arith.extui %136 : vector<2x8xi1> to vector<2x8xi32>
    %138 = arith.sitofp %137 : vector<2x8xi32> to vector<2x8xf32>
    %cst_54 = arith.constant dense<0.000000e+00> : vector<2x32xf32>
    %139 = tpu.matmul %138, %106, %cst_54 {dimension_numbers = #tpu.dot_dimension_numbers<[1], [0], [0], [1], [0, 0, 1, 1], [], []>} : vector<2x8xf32>, vector<8x32xf32>, vector<2x32xf32> -> vector<2x32xf32>
    %c2_55 = arith.constant 2 : index
    %c0_56 = arith.constant 0 : index
    %c0_57 = arith.constant 0 : index
    %140 = vector.load %arg5[%c2_55, %c0_56, %c0_57] : memref<4x32x128xf32, #tpu.memory_space<vmem>>, vector<1x32x128xf32>
    %141 = vector.shape_cast %140 : vector<1x32x128xf32> to vector<32x128xf32>
    %cst_58 = arith.constant dense<0.000000e+00> : vector<2x128xf32>
    %142 = tpu.matmul %139, %141, %cst_58 {dimension_numbers = #tpu.dot_dimension_numbers<[1], [0], [0], [1], [0, 0, 1, 1], [], []>} : vector<2x32xf32>, vector<32x128xf32>, vector<2x128xf32> -> vector<2x128xf32>
    %143 = arith.addf %131, %142 : vector<2x128xf32>
    %c4_i32_59 = arith.constant 4 : i32
    %144 = vector.broadcast %c4_i32_59 : i32 to vector<2x8xi32>
    %145 = arith.muli %107, %144 : vector<2x8xi32>
    %c3_i32 = arith.constant 3 : i32
    %146 = vector.broadcast %c3_i32 : i32 to vector<2x8xi32>
    %147 = arith.addi %145, %146 : vector<2x8xi32>
    %148 = arith.cmpi eq, %108, %147 : vector<2x8xi32>
    %149 = arith.extui %148 : vector<2x8xi1> to vector<2x8xi32>
    %150 = arith.sitofp %149 : vector<2x8xi32> to vector<2x8xf32>
    %cst_60 = arith.constant dense<0.000000e+00> : vector<2x32xf32>
    %151 = tpu.matmul %150, %106, %cst_60 {dimension_numbers = #tpu.dot_dimension_numbers<[1], [0], [0], [1], [0, 0, 1, 1], [], []>} : vector<2x8xf32>, vector<8x32xf32>, vector<2x32xf32> -> vector<2x32xf32>
    %c3 = arith.constant 3 : index
    %c0_61 = arith.constant 0 : index
    %c0_62 = arith.constant 0 : index
    %152 = vector.load %arg5[%c3, %c0_61, %c0_62] : memref<4x32x128xf32, #tpu.memory_space<vmem>>, vector<1x32x128xf32>
    %153 = vector.shape_cast %152 : vector<1x32x128xf32> to vector<32x128xf32>
    %cst_63 = arith.constant dense<0.000000e+00> : vector<2x128xf32>
    %154 = tpu.matmul %151, %153, %cst_63 {dimension_numbers = #tpu.dot_dimension_numbers<[1], [0], [0], [1], [0, 0, 1, 1], [], []>} : vector<2x32xf32>, vector<32x128xf32>, vector<2x128xf32> -> vector<2x128xf32>
    %155 = arith.addf %143, %154 : vector<2x128xf32>
    %c0_64 = arith.constant 0 : index
    %c0_65 = arith.constant 0 : index
    %156 = vector.load %arg6[%c0_64, %c0_65] : memref<1x128xf32, #tpu.memory_space<vmem>>, vector<1x128xf32>
    %157 = vector.broadcast %156 : vector<1x128xf32> to vector<2x128xf32>
    %158 = arith.addf %155, %157 : vector<2x128xf32>
    %cst_66 = arith.constant 0.000000e+00 : f32
    %159 = vector.broadcast %cst_66 : f32 to vector<2x128xf32>
    %160 = arith.maximumf %158, %159 : vector<2x128xf32>
    %c0_67 = arith.constant 0 : index
    %c0_68 = arith.constant 0 : index
    %161 = vector.load %arg7[%c0_67, %c0_68] : memref<128x128xf32, #tpu.memory_space<vmem>>, vector<128x128xf32>
    %cst_69 = arith.constant dense<0.000000e+00> : vector<2x128xf32>
    %162 = tpu.matmul %160, %161, %cst_69 {dimension_numbers = #tpu.dot_dimension_numbers<[1], [0], [0], [1], [0, 0, 1, 1], [], []>} : vector<2x128xf32>, vector<128x128xf32>, vector<2x128xf32> -> vector<2x128xf32>
    %c0_70 = arith.constant 0 : index
    %c0_71 = arith.constant 0 : index
    %163 = vector.load %arg8[%c0_70, %c0_71] : memref<1x128xf32, #tpu.memory_space<vmem>>, vector<1x128xf32>
    %164 = vector.broadcast %163 : vector<1x128xf32> to vector<2x128xf32>
    %165 = arith.addf %162, %164 : vector<2x128xf32>
    %c0_72 = arith.constant 0 : index
    %c0_73 = arith.constant 0 : index
    %166 = vector.load %arg9[%c0_72, %c0_73] : memref<2x128xf32, #tpu.memory_space<vmem>>, vector<2x128xf32>
    tpu.vector_store %arg9[%c0_72, %c0_73], %165 {strides = array<i32>} : memref<2x128xf32, #tpu.memory_space<vmem>>, vector<2x128xf32>,
    return
  }
}

</mosaic_0001>

<llo_original>
// kernel: simple_cnn_forward.1
$region0: #{simple_cnn_forward.1}
  #allocation0 [shape = 'u32[]', space=smem, size = 0x4, offset = 0x4, fixed_abs, tag = 'smem constant byte address 0x4 - core index']
  #allocation1 [shape = 'u32[144,128]{1,0:T(1,128)}', space=vmem, size = 0x12000, scoped, tag = 'internal scratch']
  %s0 = inlined_call_operand.vmem [shape: f32[32,1], index: 0, kind: input, shape index: {}]
  %s1 = inlined_call_operand.vmem [shape: f32[3,1,16], index: 1, kind: input, shape index: {}]
  %s2 = inlined_call_operand.vmem [shape: f32[1,16], index: 2, kind: input, shape index: {}]
  %s3 = inlined_call_operand.vmem [shape: f32[3,16,32], index: 3, kind: input, shape index: {}]
  %s4 = inlined_call_operand.vmem [shape: f32[1,32], index: 4, kind: input, shape index: {}]
  %s5 = inlined_call_operand.hbm [shape: f32[4,32,128], index: 5, kind: input, shape index: {}]
  %s6 = inlined_call_operand.vmem [shape: f32[1,128], index: 6, kind: input, shape index: {}]
  %s7 = inlined_call_operand.hbm [shape: f32[128,128], index: 7, kind: input, shape index: {}]
  %s8 = inlined_call_operand.vmem [shape: f32[1,128], index: 8, kind: input, shape index: {}]
  %s9 = inlined_call_operand.hbm [shape: f32[2,128], index: 9, kind: output, shape index: {}]
  %s10 = sld [smem:[#allocation0]]
  $region54: #{simple_cnn_forward.1} parent=0
    _
  %s12 = ssub.s32 1, %s10
  %s13 = scalar_select 0, %s12, %s10
  $region1: #{simple_cnn_forward.1} parent=0
    #allocation2 [shape = 'u8[65536]{0}', space=vmem, size = 0x10000, scoped, tag = 'input window, operand 5, single buffered']
    #allocation3 [shape = 's32[1]{0}', space=sflag, size = 0x4, scoped, tag = 'scoped memory for simple_cnn_forward.1']
    #allocation4 [shape = 's32[1]{0}', space=sflag, size = 0x4, scoped, tag = 'scoped memory for simple_cnn_forward.1']
    #allocation5 [shape = 'u8[65536]{0}', space=vmem, size = 0x10000, scoped, tag = 'input window, operand 7, single buffered']
    #allocation6 [shape = 's32[1]{0}', space=sflag, size = 0x4, scoped, tag = 'scoped memory for simple_cnn_forward.1']
    #allocation7 [shape = 'u8[1024]{0}', space=vmem, size = 0x400, scoped, tag = 'output window, operand 0, single buffered']
    %14 = vsyncpa [#allocation3], 0
    %15 = vsyncpa [#allocation6], 0
    %16 = vsyncpa [#allocation4], 0
    // Predicated region
    $region2: #{simple_cnn_forward.1} parent=1 // pred_check
      _
    $region3: #{simple_cnn_forward.1} parent=1 // pred_check_branch
      %18 = sbr.rel (0) target = $region5
    $region4: #{simple_cnn_forward.1} parent=1 // pred_region
      _
    $region5: #{simple_cnn_forward.1} parent=1 // pred_fallthru
      _
    // Predicated region
    $region6: #{simple_cnn_forward.1} parent=1 // pred_check
      _
    $region7: #{simple_cnn_forward.1} parent=1 // pred_check_branch
      %20 = sbr.rel (0) target = $region9
    $region8: #{simple_cnn_forward.1} parent=1 // pred_region
      _
    $region9: #{simple_cnn_forward.1} parent=1 // pred_fallthru
      _
    // Predicated region
    $region10: #{simple_cnn_forward.1} parent=1 // pred_check
      _
    $region11: #{simple_cnn_forward.1} parent=1 // pred_check_branch
      %22 = sbr.rel (0) target = $region13
    $region12: #{simple_cnn_forward.1} parent=1 // pred_region
      _
    $region13: #{simple_cnn_forward.1} parent=1 // pred_fallthru
      _
    // Predicated region
    $region14: #{simple_cnn_forward.1} parent=1 // pred_check
      _
    $region15: #{simple_cnn_forward.1} parent=1 // pred_check_branch
      %24 = sbr.rel (0) target = $region17
    $region16: #{simple_cnn_forward.1} parent=1 // pred_region
      _
    $region17: #{simple_cnn_forward.1} parent=1 // pred_fallthru
      _
    // Predicated region
    $region18: #{simple_cnn_forward.1} parent=1 // pred_check
      _
    $region19: #{simple_cnn_forward.1} parent=1 // pred_check_branch
      %26 = sbr.rel (0) target = $region21
    $region20: #{simple_cnn_forward.1} parent=1 // pred_region
      _
    $region21: #{simple_cnn_forward.1} parent=1 // pred_fallthru
      _
    // Predicated region
    $region22: #{simple_cnn_forward.1} parent=1 // pred_check
      _
    $region23: #{simple_cnn_forward.1} parent=1 // pred_check_branch
      %28 = sbr.rel (0) target = $region25
    $region24: #{simple_cnn_forward.1} parent=1 // pred_region
      %s30 = ssub.s32 2048, 2048
      %31 = vsyncadd [#allocation3], %s30
      %s32 = sshll.u32 [#allocation2], 4
      %s33 = int_to_ptr.vmem [resolvable:$true] %s32
      %38 = dma.hbm_to_vmem [thread:$0]  %s5, 2048, %s33, [#allocation3], 128, 128, 8
    $region25: #{simple_cnn_forward.1} parent=1 // pred_fallthru
      _
    // Predicated region
    $region26: #{simple_cnn_forward.1} parent=1 // pred_check
      _
    $region27: #{simple_cnn_forward.1} parent=1 // pred_check_branch
      %40 = sbr.rel (0) target = $region29
    $region28: #{simple_cnn_forward.1} parent=1 // pred_region
      _
    $region29: #{simple_cnn_forward.1} parent=1 // pred_fallthru
      _
    // Predicated region
    $region30: #{simple_cnn_forward.1} parent=1 // pred_check
      _
    $region31: #{simple_cnn_forward.1} parent=1 // pred_check_branch
      %42 = sbr.rel (0) target = $region33
    $region32: #{simple_cnn_forward.1} parent=1 // pred_region
      %s44 = ssub.s32 2048, 2048
      %45 = vsyncadd [#allocation6], %s44
      %s46 = sshll.u32 [#allocation5], 4
      %s47 = int_to_ptr.vmem [resolvable:$true] %s46
      %52 = dma.hbm_to_vmem [thread:$0]  %s7, 2048, %s47, [#allocation6], 128, 128, 8
    $region33: #{simple_cnn_forward.1} parent=1 // pred_fallthru
      _
    // Predicated region
    $region34: #{simple_cnn_forward.1} parent=1 // pred_check
      _
    $region35: #{simple_cnn_forward.1} parent=1 // pred_check_branch
      %54 = sbr.rel (0) target = $region37
    $region36: #{simple_cnn_forward.1} parent=1 // pred_region
      _
    $region37: #{simple_cnn_forward.1} parent=1 // pred_fallthru
      _
    // Predicated region
    $region38: #{simple_cnn_forward.1} parent=1 // pred_check
      _
    $region39: #{simple_cnn_forward.1} parent=1 // pred_check_branch
      %56 = sbr.rel (0) target = $region41
    $region40: #{simple_cnn_forward.1} parent=1 // pred_region
      %57 = dma.done [#allocation3], 2048
    $region41: #{simple_cnn_forward.1} parent=1 // pred_fallthru
      _
    // Predicated region
    $region42: #{simple_cnn_forward.1} parent=1 // pred_check
      _
    $region43: #{simple_cnn_forward.1} parent=1 // pred_check_branch
      %59 = sbr.rel (0) target = $region45
    $region44: #{simple_cnn_forward.1} parent=1 // pred_region
      %60 = dma.done [#allocation6], 2048
    $region45: #{simple_cnn_forward.1} parent=1 // pred_fallthru
      _
    %v61 = vld [vmem:[%s0] sm:$0xff]
    %v62 = vld [vmem:[%s0 + $0x8] sm:$0xff]
    %v63 = vld [vmem:[%s0 + $0x10] sm:$0xff]
    %v64 = vld [vmem:[%s0 + $0x18] sm:$0xff]
    %v65 = vld [vmem:[%s1] sm:$0x1]
    %67 = vset.pattern.permute.xlu0 0
    %68 = vperm.xlu0 %67, %v61
    %v69 = vpop.permute.xlu0 %68
    %72 = vset.pattern.permute.xlu0 0
    %73 = vperm.xlu0 %72, %v62
    %v74 = vpop.permute.xlu0 %73
    %77 = vset.pattern.permute.xlu0 0
    %78 = vperm.xlu0 %77, %v63
    %v79 = vpop.permute.xlu0 %78
    %82 = vset.pattern.permute.xlu0 0
    %83 = vperm.xlu0 %82, %v64
    %v84 = vpop.permute.xlu0 %83
    %v87 = vlaneseq
    %v88 = vshrl.u32 %v87, 7
    %v89 = vsub.s32 0, %v88
    %v90 = vrot.slane %v65, %v89
    %v92 = vmul.f32 %v69, %v90
    %v93 = vmul.f32 %v74, %v90
    %v94 = vmul.f32 %v79, %v90
    %v95 = vmul.f32 %v84, %v90
    %s96 = scalar_lea.vmem %s1, 1
    %v97 = vld [vmem:[%s96] sm:$0x1]
    %v99 = vlaneseq
    %v100 = vshrl.u32 %v99, 7
    %v101 = vsub.s32 0, %v100
    %v102 = vrot.slane %v97, %v101
    %v104 = vmul.f32 %v69, %v102
    %v105 = vmul.f32 %v74, %v102
    %v106 = vmul.f32 %v79, %v102
    %v107 = vmul.f32 %v84, %v102
    %s108 = scalar_lea.vmem %s1, 2
    %v109 = vld [vmem:[%s108] sm:$0x1]
    %v111 = vlaneseq
    %v112 = vshrl.u32 %v111, 7
    %v113 = vsub.s32 0, %v112
    %v114 = vrot.slane %v109, %v113
    %v116 = vmul.f32 %v69, %v114
    %v117 = vmul.f32 %v74, %v114
    %v118 = vmul.f32 %v79, %v114
    %v119 = vmul.f32 %v84, %v114
    %v120 = vlaneseq
    %v121 = vshrl.u32 %v120, 7
    %v122 = vadd.s32 %v121, 8
    %v123 = vadd.s32 %v121, 16
    %v124 = vadd.s32 %v121, 24
    %vm125 = vcmp.eq.s32.totalorder %v121, 0
    %vm126 = vcmp.eq.s32.totalorder %v122, 0
    %vm127 = vcmp.eq.s32.totalorder %v123, 0
    %vm128 = vcmp.eq.s32.totalorder %v124, 0
    %vm129 = vcmp.eq.s32.totalorder %v121, 16
    %vm130 = vcmp.eq.s32.totalorder %v122, 16
    %vm131 = vcmp.eq.s32.totalorder %v123, 16
    %vm132 = vcmp.eq.s32.totalorder %v124, 16
    %vm133 = vmor %vm125, %vm129
    %vm134 = vmor %vm126, %vm130
    %vm135 = vmor %vm127, %vm131
    %vm136 = vmor %vm128, %vm132
    %vm137 = vmxor %vm133, 1
    %vm138 = vmxor %vm134, 1
    %vm139 = vmxor %vm135, 1
    %vm140 = vmxor %vm136, 1
    %v141 = vsel %vm137, 1, 0
    %v142 = vsel %vm138, 1, 0
    %v143 = vsel %vm139, 1, 0
    %v144 = vsel %vm140, 1, 0
    %v145 = vcvt.s32.f32 %v141
    %v146 = vcvt.s32.f32 %v142
    %v147 = vcvt.s32.f32 %v143
    %v148 = vcvt.s32.f32 %v144
    %v149 = vrot.slane %v92, 7
    %v150 = vrot.slane %v93, 7
    %v151 = vrot.slane %v94, 7
    %v152 = vrot.slane %v95, 7
    %vm153 = vcmp.lt.s32.totalorder %v121, 1
    %v154 = vsel %vm153, %v151, %v152
    %v155 = vsel %vm153, %v150, %v151
    %v156 = vsel %vm153, %v149, %v150
    %v157 = vsel %vm153, %v152, %v149
    %v158 = vmul.f32 %v145, %v157
    %v159 = vmul.f32 %v146, %v156
    %v160 = vmul.f32 %v147, %v155
    %v161 = vmul.f32 %v148, %v154
    %v162 = vadd.f32 %v158, %v104
    %v163 = vadd.f32 %v159, %v105
    %v164 = vadd.f32 %v160, %v106
    %v165 = vadd.f32 %v161, %v107
    %vm166 = vcmp.eq.s32.totalorder %v121, 15
    %vm167 = vcmp.eq.s32.totalorder %v122, 15
    %vm168 = vcmp.eq.s32.totalorder %v123, 15
    %vm169 = vcmp.eq.s32.totalorder %v124, 15
    %vm170 = vcmp.eq.s32.totalorder %v121, 31
    %vm171 = vcmp.eq.s32.totalorder %v122, 31
    %vm172 = vcmp.eq.s32.totalorder %v123, 31
    %vm173 = vcmp.eq.s32.totalorder %v124, 31
    %vm174 = vmor %vm166, %vm170
    %vm175 = vmor %vm167, %vm171
    %vm176 = vmor %vm168, %vm172
    %vm177 = vmor %vm169, %vm173
    %vm178 = vmxor %vm174, 1
    %vm179 = vmxor %vm175, 1
    %vm180 = vmxor %vm176, 1
    %vm181 = vmxor %vm177, 1
    %v182 = vsel %vm178, 1, 0
    %v183 = vsel %vm179, 1, 0
    %v184 = vsel %vm180, 1, 0
    %v185 = vsel %vm181, 1, 0
    %v186 = vcvt.s32.f32 %v182
    %v187 = vcvt.s32.f32 %v183
    %v188 = vcvt.s32.f32 %v184
    %v189 = vcvt.s32.f32 %v185
    %v190 = vrot.slane %v116, 1
    %v191 = vrot.slane %v117, 1
    %v192 = vrot.slane %v118, 1
    %v193 = vrot.slane %v119, 1
    %vm194 = vcmp.lt.s32.totalorder %v121, 7
    %v195 = vsel %vm194, %v192, %v193
    %v196 = vsel %vm194, %v191, %v192
    %v197 = vsel %vm194, %v190, %v191
    %v198 = vsel %vm194, %v193, %v190
    %v199 = vmul.f32 %v186, %v197
    %v200 = vmul.f32 %v187, %v196
    %v201 = vmul.f32 %v188, %v195
    %v202 = vmul.f32 %v189, %v198
    %v203 = vadd.f32 %v162, %v199
    %v204 = vadd.f32 %v163, %v200
    %v205 = vadd.f32 %v164, %v201
    %v206 = vadd.f32 %v165, %v202
    %v207 = vld [vmem:[%s2] sm:$0x1]
    %v209 = vlaneseq
    %v210 = vshrl.u32 %v209, 7
    %v211 = vsub.s32 0, %v210
    %v212 = vrot.slane %v207, %v211
    %v214 = vadd.f32 %v203, %v212
    %v215 = vadd.f32 %v204, %v212
    %v216 = vadd.f32 %v205, %v212
    %v217 = vadd.f32 %v206, %v212
    %v218 = vmax.f32 %v214, 0.0
    %v219 = vmax.f32 %v215, 0.0
    %v220 = vmax.f32 %v216, 0.0
    %v221 = vmax.f32 %v217, 0.0
    %v222 = vrot.slane %v218, 1
    %v223 = vrot.slane %v219, 1
    %v224 = vrot.slane %v220, 1
    %v225 = vrot.slane %v221, 1
    %v226 = vsel %vm194, %v224, %v225
    %v227 = vsel %vm194, %v223, %v224
    %v228 = vsel %vm194, %v222, %v223
    %v229 = vsel %vm194, %v225, %v222
    %v230 = vmax.f32 %v218, %v228
    %v231 = vmax.f32 %v219, %v227
    %v232 = vmax.f32 %v220, %v226
    %v233 = vmax.f32 %v221, %v229
    %v234 = vlaneseq
    %v235 = vand.u32 %v234, 127
    %v236 = vmul.u32 %v121, 2
    %v237 = vmul.u32 %v122, 2
    %vm238 = vcmp.eq.s32.totalorder %v235, %v236
    %vm239 = vcmp.eq.s32.totalorder %v235, %v237
    %v240 = vsel %vm238, 1, 0
    %v241 = vsel %vm239, 1, 0
    %v242 = vcvt.s32.f32 %v240
    %v243 = vcvt.s32.f32 %v241
    %vm244 = vcmask 261120
    %v246 = vsel %vm244, %v242, 0
    %v249 = vsel %vm244, %v243, 0
    %251 = vmatprep.subr.mxu0 0.0
    %252 = vmatpush1.msra.mxu0 %v230
    %253 = vmatprep.subr.mxu0 0.0
    %254 = vmatpush1.msra.mxu0 %v231
    %255 = vmatprep.subr.mxu0 0.0
    %256 = vmatpush1.msra.mxu0 %v232
    %257 = vmatprep.subr.mxu0 0.0
    %258 = vmatpush1.msra.mxu0 %v233
    %259 = vmatprep.subr.mxu0 0.0
    %260 = vmatpush1.msra.mxu0 0.0
    %261 = vmatprep.subr.mxu0 0.0
    %262 = vmatpush1.msra.mxu0 0.0
    %263 = vmatprep.subr.mxu0 0.0
    %264 = vmatpush1.msra.mxu0 0.0
    %265 = vmatprep.subr.mxu0 0.0
    %266 = vmatpush1.msra.mxu0 0.0
    %267 = vmatprep.subr.mxu0 0.0
    %268 = vmatpush1.msra.mxu0 0.0
    %269 = vmatprep.subr.mxu0 0.0
    %270 = vmatpush1.msra.mxu0 0.0
    %271 = vmatprep.subr.mxu0 0.0
    %272 = vmatpush1.msra.mxu0 0.0
    %273 = vmatprep.subr.mxu0 0.0
    %274 = vmatpush1.msra.mxu0 0.0
    %275 = vmatprep.subr.mxu0 0.0
    %276 = vmatpush1.msra.mxu0 0.0
    %277 = vmatprep.subr.mxu0 0.0
    %278 = vmatpush1.msra.mxu0 0.0
    %279 = vmatprep.subr.mxu0 0.0
    %280 = vmatpush1.msra.mxu0 0.0
    %281 = vmatprep.subr.mxu0 0.0
    %282 = vmatpush1.msra.mxu0 0.0
    %283 = vmatprep.subr.mxu0 0.0
    %284 = vmatpush1.msra.mxu0 0.0
    %285 = vmatprep.subr.mxu0 0.0
    %286 = vmatpush1.msra.mxu0 0.0
    %287 = vmatprep.subr.mxu0 0.0
    %288 = vmatpush1.msra.mxu0 0.0
    %289 = vmatprep.subr.mxu0 0.0
    %290 = vmatpush1.msra.mxu0 0.0
    %291 = vmatprep.subr.mxu0 0.0
    %292 = vmatpush1.msra.mxu0 0.0
    %293 = vmatprep.subr.mxu0 0.0
    %294 = vmatpush1.msra.mxu0 0.0
    %295 = vmatprep.subr.mxu0 0.0
    %296 = vmatpush1.msra.mxu0 0.0
    %297 = vmatprep.subr.mxu0 0.0
    %298 = vmatpush1.msra.mxu0 0.0
    %299 = vmatprep.subr.mxu0 0.0
    %300 = vmatpush1.msra.mxu0 0.0
    %301 = vmatprep.subr.mxu0 0.0
    %302 = vmatpush1.msra.mxu0 0.0
    %303 = vmatprep.subr.mxu0 0.0
    %304 = vmatpush1.msra.mxu0 0.0
    %305 = vmatprep.subr.mxu0 0.0
    %306 = vmatpush1.msra.mxu0 0.0
    %307 = vmatprep.subr.mxu0 0.0
    %308 = vmatpush1.msra.mxu0 0.0
    %309 = vmatprep.subr.mxu0 0.0
    %310 = vmatpush1.msra.mxu0 0.0
    %311 = vmatprep.subr.mxu0 0.0
    %312 = vmatpush1.msra.mxu0 0.0
    %313 = vmatprep.subr.mxu0 0.0
    %314 = vmatpush1.msra.mxu0 0.0
    %315 = vmatprep.mubr.f32.mxu0 0.0
    %316 = vmatmul.mubr.f32.gmra.mrb[0].mxu0 %v246
    %v317 = vpop.f32.mrb[0].mxu0
    %v318 = vadd.f32 0.0, %v317
    %v319 = vpop.f32.mrb[0].mxu0
    %320 = vmatprep.mubr.f32.mxu0 0.0
    %321 = vmatmul.mubr.f32.gmra.mrb[0].mxu0 %v249
    %v322 = vpop.f32.mrb[0].mxu0
    %v323 = vadd.f32 0.0, %v322
    %v324 = vpop.f32.mrb[0].mxu0
    %325 = vdwg.mxu0
    %vm326 = vcmp.eq.s32.totalorder %v121, 8
    %vm327 = vcmp.eq.s32.totalorder %v122, 8
    %vm328 = vmor %vm125, %vm326
    %vm329 = vmor %vm126, %vm327
    %vm330 = vmxor %vm328, 1
    %vm331 = vmxor %vm329, 1
    %v332 = vsel %vm330, 1, 0
    %v333 = vsel %vm331, 1, 0
    %v334 = vcvt.s32.f32 %v332
    %v335 = vcvt.s32.f32 %v333
    %v336 = vrot.slane %v318, 7
    %v337 = vrot.slane %v323, 7
    %v338 = vsel %vm153, %v336, %v337
    %v339 = vsel %vm153, %v337, %v336
    %v340 = vmul.f32 %v334, %v339
    %v341 = vmul.f32 %v335, %v338
    %vm342 = vcmp.eq.s32.totalorder %v121, 7
    %vm343 = vcmp.eq.s32.totalorder %v122, 7
    %vm344 = vmor %vm342, %vm166
    %vm345 = vmor %vm343, %vm167
    %vm346 = vmxor %vm344, 1
    %vm347 = vmxor %vm345, 1
    %v348 = vsel %vm346, 1, 0
    %v349 = vsel %vm347, 1, 0
    %v350 = vcvt.s32.f32 %v348
    %v351 = vcvt.s32.f32 %v349
    %v352 = vrot.slane %v318, 1
    %v353 = vrot.slane %v323, 1
    %v354 = vsel %vm194, %v352, %v353
    %v355 = vsel %vm194, %v353, %v352
    %v356 = vmul.f32 %v350, %v354
    %v357 = vmul.f32 %v351, %v355
    %v358 = vld [vmem:[%s3] sm:$0xff]
    %v359 = vld [vmem:[%s3 + $0x8] sm:$0xff]
    %s360 = scalar_lea.vmem %s3, 16
    %v361 = vld [vmem:[%s360] sm:$0xff]
    %v362 = vld [vmem:[%s360 + $0x8] sm:$0xff]
    %vm363 = vcmask 130048
    %v365 = vsel %vm363, %v318, 0
    %v368 = vsel %vm363, %v323, 0
    %370 = vmatprep.subr.mxu0 0.0
    %371 = vmatpush1.msra.mxu0 %v361
    %372 = vmatprep.subr.mxu0 0.0
    %373 = vmatpush1.msra.mxu0 %v362
    %374 = vmatprep.subr.mxu0 0.0
    %375 = vmatpush1.msra.mxu0 0.0
    %376 = vmatprep.subr.mxu0 0.0
    %377 = vmatpush1.msra.mxu0 0.0
    %378 = vmatprep.subr.mxu0 0.0
    %379 = vmatpush1.msra.mxu0 0.0
    %380 = vmatprep.subr.mxu0 0.0
    %381 = vmatpush1.msra.mxu0 0.0
    %382 = vmatprep.subr.mxu0 0.0
    %383 = vmatpush1.msra.mxu0 0.0
    %384 = vmatprep.subr.mxu0 0.0
    %385 = vmatpush1.msra.mxu0 0.0
    %386 = vmatprep.subr.mxu0 0.0
    %387 = vmatpush1.msra.mxu0 0.0
    %388 = vmatprep.subr.mxu0 0.0
    %389 = vmatpush1.msra.mxu0 0.0
    %390 = vmatprep.subr.mxu0 0.0
    %391 = vmatpush1.msra.mxu0 0.0
    %392 = vmatprep.subr.mxu0 0.0
    %393 = vmatpush1.msra.mxu0 0.0
    %394 = vmatprep.subr.mxu0 0.0
    %395 = vmatpush1.msra.mxu0 0.0
    %396 = vmatprep.subr.mxu0 0.0
    %397 = vmatpush1.msra.mxu0 0.0
    %398 = vmatprep.subr.mxu0 0.0
    %399 = vmatpush1.msra.mxu0 0.0
    %400 = vmatprep.subr.mxu0 0.0
    %401 = vmatpush1.msra.mxu0 0.0
    %402 = vmatprep.subr.mxu0 0.0
    %403 = vmatpush1.msra.mxu0 0.0
    %404 = vmatprep.subr.mxu0 0.0
    %405 = vmatpush1.msra.mxu0 0.0
    %406 = vmatprep.subr.mxu0 0.0
    %407 = vmatpush1.msra.mxu0 0.0
    %408 = vmatprep.subr.mxu0 0.0
    %409 = vmatpush1.msra.mxu0 0.0
    %410 = vmatprep.subr.mxu0 0.0
    %411 = vmatpush1.msra.mxu0 0.0
    %412 = vmatprep.subr.mxu0 0.0
    %413 = vmatpush1.msra.mxu0 0.0
    %414 = vmatprep.subr.mxu0 0.0
    %415 = vmatpush1.msra.mxu0 0.0
    %416 = vmatprep.subr.mxu0 0.0
    %417 = vmatpush1.msra.mxu0 0.0
    %418 = vmatprep.subr.mxu0 0.0
    %419 = vmatpush1.msra.mxu0 0.0
    %420 = vmatprep.subr.mxu0 0.0
    %421 = vmatpush1.msra.mxu0 0.0
    %422 = vmatprep.subr.mxu0 0.0
    %423 = vmatpush1.msra.mxu0 0.0
    %424 = vmatprep.subr.mxu0 0.0
    %425 = vmatpush1.msra.mxu0 0.0
    %426 = vmatprep.subr.mxu0 0.0
    %427 = vmatpush1.msra.mxu0 0.0
    %428 = vmatprep.subr.mxu0 0.0
    %429 = vmatpush1.msra.mxu0 0.0
    %430 = vmatprep.subr.mxu0 0.0
    %431 = vmatpush1.msra.mxu0 0.0
    %432 = vmatprep.subr.mxu0 0.0
    %433 = vmatpush1.msra.mxu0 0.0
    %434 = vmatprep.mubr.f32.mxu0 0.0
    %435 = vmatmul.mubr.f32.gmra.mrb[0].mxu0 %v365
    %v436 = vpop.f32.mrb[0].mxu0
    %v437 = vadd.f32 0.0, %v436
    %v438 = vpop.f32.mrb[0].mxu0
    %439 = vmatprep.mubr.f32.mxu0 0.0
    %440 = vmatmul.mubr.f32.gmra.mrb[0].mxu0 %v368
    %v441 = vpop.f32.mrb[0].mxu0
    %v442 = vadd.f32 0.0, %v441
    %v443 = vpop.f32.mrb[0].mxu0
    %444 = vdwg.mxu0
    %v446 = vsel %vm363, %v340, 0
    %v449 = vsel %vm363, %v341, 0
    %451 = vmatprep.subr.mxu0 0.0
    %452 = vmatpush1.msra.mxu0 %v358
    %453 = vmatprep.subr.mxu0 0.0
    %454 = vmatpush1.msra.mxu0 %v359
    %455 = vmatprep.subr.mxu0 0.0
    %456 = vmatpush1.msra.mxu0 0.0
    %457 = vmatprep.subr.mxu0 0.0
    %458 = vmatpush1.msra.mxu0 0.0
    %459 = vmatprep.subr.mxu0 0.0
    %460 = vmatpush1.msra.mxu0 0.0
    %461 = vmatprep.subr.mxu0 0.0
    %462 = vmatpush1.msra.mxu0 0.0
    %463 = vmatprep.subr.mxu0 0.0
    %464 = vmatpush1.msra.mxu0 0.0
    %465 = vmatprep.subr.mxu0 0.0
    %466 = vmatpush1.msra.mxu0 0.0
    %467 = vmatprep.subr.mxu0 0.0
    %468 = vmatpush1.msra.mxu0 0.0
    %469 = vmatprep.subr.mxu0 0.0
    %470 = vmatpush1.msra.mxu0 0.0
    %471 = vmatprep.subr.mxu0 0.0
    %472 = vmatpush1.msra.mxu0 0.0
    %473 = vmatprep.subr.mxu0 0.0
    %474 = vmatpush1.msra.mxu0 0.0
    %475 = vmatprep.subr.mxu0 0.0
    %476 = vmatpush1.msra.mxu0 0.0
    %477 = vmatprep.subr.mxu0 0.0
    %478 = vmatpush1.msra.mxu0 0.0
    %479 = vmatprep.subr.mxu0 0.0
    %480 = vmatpush1.msra.mxu0 0.0
    %481 = vmatprep.subr.mxu0 0.0
    %482 = vmatpush1.msra.mxu0 0.0
    %483 = vmatprep.subr.mxu0 0.0
    %484 = vmatpush1.msra.mxu0 0.0
    %485 = vmatprep.subr.mxu0 0.0
    %486 = vmatpush1.msra.mxu0 0.0
    %487 = vmatprep.subr.mxu0 0.0
    %488 = vmatpush1.msra.mxu0 0.0
    %489 = vmatprep.subr.mxu0 0.0
    %490 = vmatpush1.msra.mxu0 0.0
    %491 = vmatprep.subr.mxu0 0.0
    %492 = vmatpush1.msra.mxu0 0.0
    %493 = vmatprep.subr.mxu0 0.0
    %494 = vmatpush1.msra.mxu0 0.0
    %495 = vmatprep.subr.mxu0 0.0
    %496 = vmatpush1.msra.mxu0 0.0
    %497 = vmatprep.subr.mxu0 0.0
    %498 = vmatpush1.msra.mxu0 0.0
    %499 = vmatprep.subr.mxu0 0.0
    %500 = vmatpush1.msra.mxu0 0.0
    %501 = vmatprep.subr.mxu0 0.0
    %502 = vmatpush1.msra.mxu0 0.0
    %503 = vmatprep.subr.mxu0 0.0
    %504 = vmatpush1.msra.mxu0 0.0
    %505 = vmatprep.subr.mxu0 0.0
    %506 = vmatpush1.msra.mxu0 0.0
    %507 = vmatprep.subr.mxu0 0.0
    %508 = vmatpush1.msra.mxu0 0.0
    %509 = vmatprep.subr.mxu0 0.0
    %510 = vmatpush1.msra.mxu0 0.0
    %511 = vmatprep.subr.mxu0 0.0
    %512 = vmatpush1.msra.mxu0 0.0
    %513 = vmatprep.subr.mxu0 0.0
    %514 = vmatpush1.msra.mxu0 0.0
    %515 = vmatprep.mubr.f32.mxu0 0.0
    %516 = vmatmul.mubr.f32.gmra.mrb[0].mxu0 %v446
    %v517 = vpop.f32.mrb[0].mxu0
    %v518 = vadd.f32 %v437, %v517
    %v519 = vpop.f32.mrb[0].mxu0
    %520 = vmatprep.mubr.f32.mxu0 0.0
    %521 = vmatmul.mubr.f32.gmra.mrb[0].mxu0 %v449
    %v522 = vpop.f32.mrb[0].mxu0
    %v523 = vadd.f32 %v442, %v522
    %v524 = vpop.f32.mrb[0].mxu0
    %525 = vdwg.mxu0
    %s526 = scalar_lea.vmem %s3, 32
    %v527 = vld [vmem:[%s526] sm:$0xff]
    %v528 = vld [vmem:[%s526 + $0x8] sm:$0xff]
    %v530 = vsel %vm363, %v356, 0
    %v533 = vsel %vm363, %v357, 0
    %535 = vmatprep.subr.mxu0 0.0
    %536 = vmatpush1.msra.mxu0 %v527
    %537 = vmatprep.subr.mxu0 0.0
    %538 = vmatpush1.msra.mxu0 %v528
    %539 = vmatprep.subr.mxu0 0.0
    %540 = vmatpush1.msra.mxu0 0.0
    %541 = vmatprep.subr.mxu0 0.0
    %542 = vmatpush1.msra.mxu0 0.0
    %543 = vmatprep.subr.mxu0 0.0
    %544 = vmatpush1.msra.mxu0 0.0
    %545 = vmatprep.subr.mxu0 0.0
    %546 = vmatpush1.msra.mxu0 0.0
    %547 = vmatprep.subr.mxu0 0.0
    %548 = vmatpush1.msra.mxu0 0.0
    %549 = vmatprep.subr.mxu0 0.0
    %550 = vmatpush1.msra.mxu0 0.0
    %551 = vmatprep.subr.mxu0 0.0
    %552 = vmatpush1.msra.mxu0 0.0
    %553 = vmatprep.subr.mxu0 0.0
    %554 = vmatpush1.msra.mxu0 0.0
    %555 = vmatprep.subr.mxu0 0.0
    %556 = vmatpush1.msra.mxu0 0.0
    %557 = vmatprep.subr.mxu0 0.0
    %558 = vmatpush1.msra.mxu0 0.0
    %559 = vmatprep.subr.mxu0 0.0
    %560 = vmatpush1.msra.mxu0 0.0
    %561 = vmatprep.subr.mxu0 0.0
    %562 = vmatpush1.msra.mxu0 0.0
    %563 = vmatprep.subr.mxu0 0.0
    %564 = vmatpush1.msra.mxu0 0.0
    %565 = vmatprep.subr.mxu0 0.0
    %566 = vmatpush1.msra.mxu0 0.0
    %567 = vmatprep.subr.mxu0 0.0
    %568 = vmatpush1.msra.mxu0 0.0
    %569 = vmatprep.subr.mxu0 0.0
    %570 = vmatpush1.msra.mxu0 0.0
    %571 = vmatprep.subr.mxu0 0.0
    %572 = vmatpush1.msra.mxu0 0.0
    %573 = vmatprep.subr.mxu0 0.0
    %574 = vmatpush1.msra.mxu0 0.0
    %575 = vmatprep.subr.mxu0 0.0
    %576 = vmatpush1.msra.mxu0 0.0
    %577 = vmatprep.subr.mxu0 0.0
    %578 = vmatpush1.msra.mxu0 0.0
    %579 = vmatprep.subr.mxu0 0.0
    %580 = vmatpush1.msra.mxu0 0.0
    %581 = vmatprep.subr.mxu0 0.0
    %582 = vmatpush1.msra.mxu0 0.0
    %583 = vmatprep.subr.mxu0 0.0
    %584 = vmatpush1.msra.mxu0 0.0
    %585 = vmatprep.subr.mxu0 0.0
    %586 = vmatpush1.msra.mxu0 0.0
    %587 = vmatprep.subr.mxu0 0.0
    %588 = vmatpush1.msra.mxu0 0.0
    %589 = vmatprep.subr.mxu0 0.0
    %590 = vmatpush1.msra.mxu0 0.0
    %591 = vmatprep.subr.mxu0 0.0
    %592 = vmatpush1.msra.mxu0 0.0
    %593 = vmatprep.subr.mxu0 0.0
    %594 = vmatpush1.msra.mxu0 0.0
    %595 = vmatprep.subr.mxu0 0.0
    %596 = vmatpush1.msra.mxu0 0.0
    %597 = vmatprep.subr.mxu0 0.0
    %598 = vmatpush1.msra.mxu0 0.0
    %599 = vmatprep.mubr.f32.mxu0 0.0
    %600 = vmatmul.mubr.f32.gmra.mrb[0].mxu0 %v530
    %v601 = vpop.f32.mrb[0].mxu0
    %v602 = vadd.f32 0.0, %v601
    %v603 = vpop.f32.mrb[0].mxu0
    %604 = vmatprep.mubr.f32.mxu0 0.0
    %605 = vmatmul.mubr.f32.gmra.mrb[0].mxu0 %v533
    %v606 = vpop.f32.mrb[0].mxu0
    %v607 = vadd.f32 0.0, %v606
    %v608 = vpop.f32.mrb[0].mxu0
    %609 = vdwg.mxu0
    %v610 = vadd.f32 %v518, %v602
    %v611 = vadd.f32 %v523, %v607
    %v612 = vld [vmem:[%s4] sm:$0x1]
    %v614 = vlaneseq
    %v615 = vshrl.u32 %v614, 7
    %v616 = vsub.s32 0, %v615
    %v617 = vrot.slane %v612, %v616
    %v619 = vadd.f32 %v610, %v617
    %v620 = vadd.f32 %v611, %v617
    %v621 = vmax.f32 %v619, 0.0
    %v622 = vmax.f32 %v620, 0.0
    %v623 = vrot.slane %v621, 1
    %v624 = vrot.slane %v622, 1
    %v625 = vsel %vm194, %v623, %v624
    %v626 = vsel %vm194, %v624, %v623
    %v627 = vmax.f32 %v621, %v625
    %v628 = vmax.f32 %v622, %v626
    %v629 = vsel %vm363, %v242, 0
    %631 = vmatprep.subr.mxu0 0.0
    %632 = vmatpush1.msra.mxu0 %v627
    %633 = vmatprep.subr.mxu0 0.0
    %634 = vmatpush1.msra.mxu0 %v628
    %635 = vmatprep.subr.mxu0 0.0
    %636 = vmatpush1.msra.mxu0 0.0
    %637 = vmatprep.subr.mxu0 0.0
    %638 = vmatpush1.msra.mxu0 0.0
    %639 = vmatprep.subr.mxu0 0.0
    %640 = vmatpush1.msra.mxu0 0.0
    %641 = vmatprep.subr.mxu0 0.0
    %642 = vmatpush1.msra.mxu0 0.0
    %643 = vmatprep.subr.mxu0 0.0
    %644 = vmatpush1.msra.mxu0 0.0
    %645 = vmatprep.subr.mxu0 0.0
    %646 = vmatpush1.msra.mxu0 0.0
    %647 = vmatprep.subr.mxu0 0.0
    %648 = vmatpush1.msra.mxu0 0.0
    %649 = vmatprep.subr.mxu0 0.0
    %650 = vmatpush1.msra.mxu0 0.0
    %651 = vmatprep.subr.mxu0 0.0
    %652 = vmatpush1.msra.mxu0 0.0
    %653 = vmatprep.subr.mxu0 0.0
    %654 = vmatpush1.msra.mxu0 0.0
    %655 = vmatprep.subr.mxu0 0.0
    %656 = vmatpush1.msra.mxu0 0.0
    %657 = vmatprep.subr.mxu0 0.0
    %658 = vmatpush1.msra.mxu0 0.0
    %659 = vmatprep.subr.mxu0 0.0
    %660 = vmatpush1.msra.mxu0 0.0
    %661 = vmatprep.subr.mxu0 0.0
    %662 = vmatpush1.msra.mxu0 0.0
    %663 = vmatprep.subr.mxu0 0.0
    %664 = vmatpush1.msra.mxu0 0.0
    %665 = vmatprep.subr.mxu0 0.0
    %666 = vmatpush1.msra.mxu0 0.0
    %667 = vmatprep.subr.mxu0 0.0
    %668 = vmatpush1.msra.mxu0 0.0
    %669 = vmatprep.subr.mxu0 0.0
    %670 = vmatpush1.msra.mxu0 0.0
    %671 = vmatprep.subr.mxu0 0.0
    %672 = vmatpush1.msra.mxu0 0.0
    %673 = vmatprep.subr.mxu0 0.0
    %674 = vmatpush1.msra.mxu0 0.0
    %675 = vmatprep.subr.mxu0 0.0
    %676 = vmatpush1.msra.mxu0 0.0
    %677 = vmatprep.subr.mxu0 0.0
    %678 = vmatpush1.msra.mxu0 0.0
    %679 = vmatprep.subr.mxu0 0.0
    %680 = vmatpush1.msra.mxu0 0.0
    %681 = vmatprep.subr.mxu0 0.0
    %682 = vmatpush1.msra.mxu0 0.0
    %683 = vmatprep.subr.mxu0 0.0
    %684 = vmatpush1.msra.mxu0 0.0
    %685 = vmatprep.subr.mxu0 0.0
    %686 = vmatpush1.msra.mxu0 0.0
    %687 = vmatprep.subr.mxu0 0.0
    %688 = vmatpush1.msra.mxu0 0.0
    %689 = vmatprep.subr.mxu0 0.0
    %690 = vmatpush1.msra.mxu0 0.0
    %691 = vmatprep.subr.mxu0 0.0
    %692 = vmatpush1.msra.mxu0 0.0
    %693 = vmatprep.subr.mxu0 0.0
    %694 = vmatpush1.msra.mxu0 0.0
    %695 = vmatprep.mubr.f32.mxu0 0.0
    %696 = vmatmul.mubr.f32.gmra.mrb[0].mxu0 %v629
    %v697 = vpop.f32.mrb[0].mxu0
    %v698 = vadd.f32 0.0, %v697
    %v699 = vpop.f32.mrb[0].mxu0
    %700 = vdwg.mxu0
    %v701 = vmul.u32 %v121, 4
    %vm702 = vcmp.eq.s32.totalorder %v235, %v701
    %v703 = vsel %vm702, 1, 0
    %v704 = vcvt.s32.f32 %v703
    %vm705 = vcmask 64512
    %v707 = vsel %vm705, %v704, 0
    %709 = vmatprep.subr.mxu0 0.0
    %710 = vmatpush1.msra.mxu0 %v698
    %711 = vmatprep.subr.mxu0 0.0
    %712 = vmatpush1.msra.mxu0 0.0
    %713 = vmatprep.subr.mxu0 0.0
    %714 = vmatpush1.msra.mxu0 0.0
    %715 = vmatprep.subr.mxu0 0.0
    %716 = vmatpush1.msra.mxu0 0.0
    %717 = vmatprep.subr.mxu0 0.0
    %718 = vmatpush1.msra.mxu0 0.0
    %719 = vmatprep.subr.mxu0 0.0
    %720 = vmatpush1.msra.mxu0 0.0
    %721 = vmatprep.subr.mxu0 0.0
    %722 = vmatpush1.msra.mxu0 0.0
    %723 = vmatprep.subr.mxu0 0.0
    %724 = vmatpush1.msra.mxu0 0.0
    %725 = vmatprep.subr.mxu0 0.0
    %726 = vmatpush1.msra.mxu0 0.0
    %727 = vmatprep.subr.mxu0 0.0
    %728 = vmatpush1.msra.mxu0 0.0
    %729 = vmatprep.subr.mxu0 0.0
    %730 = vmatpush1.msra.mxu0 0.0
    %731 = vmatprep.subr.mxu0 0.0
    %732 = vmatpush1.msra.mxu0 0.0
    %733 = vmatprep.subr.mxu0 0.0
    %734 = vmatpush1.msra.mxu0 0.0
    %735 = vmatprep.subr.mxu0 0.0
    %736 = vmatpush1.msra.mxu0 0.0
    %737 = vmatprep.subr.mxu0 0.0
    %738 = vmatpush1.msra.mxu0 0.0
    %739 = vmatprep.subr.mxu0 0.0
    %740 = vmatpush1.msra.mxu0 0.0
    %741 = vmatprep.subr.mxu0 0.0
    %742 = vmatpush1.msra.mxu0 0.0
    %743 = vmatprep.subr.mxu0 0.0
    %744 = vmatpush1.msra.mxu0 0.0
    %745 = vmatprep.subr.mxu0 0.0
    %746 = vmatpush1.msra.mxu0 0.0
    %747 = vmatprep.subr.mxu0 0.0
    %748 = vmatpush1.msra.mxu0 0.0
    %749 = vmatprep.subr.mxu0 0.0
    %750 = vmatpush1.msra.mxu0 0.0
    %751 = vmatprep.subr.mxu0 0.0
    %752 = vmatpush1.msra.mxu0 0.0
    %753 = vmatprep.subr.mxu0 0.0
    %754 = vmatpush1.msra.mxu0 0.0
    %755 = vmatprep.subr.mxu0 0.0
    %756 = vmatpush1.msra.mxu0 0.0
    %757 = vmatprep.subr.mxu0 0.0
    %758 = vmatpush1.msra.mxu0 0.0
    %759 = vmatprep.subr.mxu0 0.0
    %760 = vmatpush1.msra.mxu0 0.0
    %761 = vmatprep.subr.mxu0 0.0
    %762 = vmatpush1.msra.mxu0 0.0
    %763 = vmatprep.subr.mxu0 0.0
    %764 = vmatpush1.msra.mxu0 0.0
    %765 = vmatprep.subr.mxu0 0.0
    %766 = vmatpush1.msra.mxu0 0.0
    %767 = vmatprep.subr.mxu0 0.0
    %768 = vmatpush1.msra.mxu0 0.0
    %769 = vmatprep.subr.mxu0 0.0
    %770 = vmatpush1.msra.mxu0 0.0
    %771 = vmatprep.subr.mxu0 0.0
    %772 = vmatpush1.msra.mxu0 0.0
    %773 = vmatprep.mubr.f32.mxu0 0.0
    %774 = vmatmul.mubr.f32.gmra.mrb[0].mxu0 %v707
    %v775 = vpop.f32.mrb[0].mxu0
    %v776 = vadd.f32 0.0, %v775
    %v777 = vpop.f32.mrb[0].mxu0
    %778 = vdwg.mxu0
    %v779 = vld [vmem:[#allocation2] sm:$0xff]
    %v780 = vld [vmem:[#allocation2 + $0x8] sm:$0xff]
    %v781 = vld [vmem:[#allocation2 + $0x10] sm:$0xff]
    %v782 = vld [vmem:[#allocation2 + $0x18] sm:$0xff]
    %v783 = vadd.s32 %v701, 1
    %vm784 = vcmp.eq.s32.totalorder %v235, %v783
    %v785 = vsel %vm784, 1, 0
    %v786 = vcvt.s32.f32 %v785
    %v788 = vsel %vm705, %v786, 0
    %790 = vmatprep.subr.mxu0 0.0
    %791 = vmatpush1.msra.mxu0 %v698
    %792 = vmatprep.subr.mxu0 0.0
    %793 = vmatpush1.msra.mxu0 0.0
    %794 = vmatprep.subr.mxu0 0.0
    %795 = vmatpush1.msra.mxu0 0.0
    %796 = vmatprep.subr.mxu0 0.0
    %797 = vmatpush1.msra.mxu0 0.0
    %798 = vmatprep.subr.mxu0 0.0
    %799 = vmatpush1.msra.mxu0 0.0
    %800 = vmatprep.subr.mxu0 0.0
    %801 = vmatpush1.msra.mxu0 0.0
    %802 = vmatprep.subr.mxu0 0.0
    %803 = vmatpush1.msra.mxu0 0.0
    %804 = vmatprep.subr.mxu0 0.0
    %805 = vmatpush1.msra.mxu0 0.0
    %806 = vmatprep.subr.mxu0 0.0
    %807 = vmatpush1.msra.mxu0 0.0
    %808 = vmatprep.subr.mxu0 0.0
    %809 = vmatpush1.msra.mxu0 0.0
    %810 = vmatprep.subr.mxu0 0.0
    %811 = vmatpush1.msra.mxu0 0.0
    %812 = vmatprep.subr.mxu0 0.0
    %813 = vmatpush1.msra.mxu0 0.0
    %814 = vmatprep.subr.mxu0 0.0
    %815 = vmatpush1.msra.mxu0 0.0
    %816 = vmatprep.subr.mxu0 0.0
    %817 = vmatpush1.msra.mxu0 0.0
    %818 = vmatprep.subr.mxu0 0.0
    %819 = vmatpush1.msra.mxu0 0.0
    %820 = vmatprep.subr.mxu0 0.0
    %821 = vmatpush1.msra.mxu0 0.0
    %822 = vmatprep.subr.mxu0 0.0
    %823 = vmatpush1.msra.mxu0 0.0
    %824 = vmatprep.subr.mxu0 0.0
    %825 = vmatpush1.msra.mxu0 0.0
    %826 = vmatprep.subr.mxu0 0.0
    %827 = vmatpush1.msra.mxu0 0.0
    %828 = vmatprep.subr.mxu0 0.0
    %829 = vmatpush1.msra.mxu0 0.0
    %830 = vmatprep.subr.mxu0 0.0
    %831 = vmatpush1.msra.mxu0 0.0
    %832 = vmatprep.subr.mxu0 0.0
    %833 = vmatpush1.msra.mxu0 0.0
    %834 = vmatprep.subr.mxu0 0.0
    %835 = vmatpush1.msra.mxu0 0.0
    %836 = vmatprep.subr.mxu0 0.0
    %837 = vmatpush1.msra.mxu0 0.0
    %838 = vmatprep.subr.mxu0 0.0
    %839 = vmatpush1.msra.mxu0 0.0
    %840 = vmatprep.subr.mxu0 0.0
    %841 = vmatpush1.msra.mxu0 0.0
    %842 = vmatprep.subr.mxu0 0.0
    %843 = vmatpush1.msra.mxu0 0.0
    %844 = vmatprep.subr.mxu0 0.0
    %845 = vmatpush1.msra.mxu0 0.0
    %846 = vmatprep.subr.mxu0 0.0
    %847 = vmatpush1.msra.mxu0 0.0
    %848 = vmatprep.subr.mxu0 0.0
    %849 = vmatpush1.msra.mxu0 0.0
    %850 = vmatprep.subr.mxu0 0.0
    %851 = vmatpush1.msra.mxu0 0.0
    %852 = vmatprep.subr.mxu0 0.0
    %853 = vmatpush1.msra.mxu0 0.0
    %854 = vmatprep.mubr.f32.mxu0 0.0
    %855 = vmatmul.mubr.f32.gmra.mrb[0].mxu0 %v788
    %v856 = vpop.f32.mrb[0].mxu0
    %v857 = vadd.f32 0.0, %v856
    %v858 = vpop.f32.mrb[0].mxu0
    %859 = vdwg.mxu0
    %s860 = scalar_lea.vmem [#allocation2], 32
    %v861 = vld [vmem:[%s860] sm:$0xff]
    %v862 = vld [vmem:[%s860 + $0x8] sm:$0xff]
    %v863 = vld [vmem:[%s860 + $0x10] sm:$0xff]
    %v864 = vld [vmem:[%s860 + $0x18] sm:$0xff]
    %v866 = vsel %vm244, %v857, 0
    %868 = vmatprep.subr.mxu0 0.0
    %869 = vmatpush1.msra.mxu0 %v861
    %870 = vmatprep.subr.mxu0 0.0
    %871 = vmatpush1.msra.mxu0 %v862
    %872 = vmatprep.subr.mxu0 0.0
    %873 = vmatpush1.msra.mxu0 %v863
    %874 = vmatprep.subr.mxu0 0.0
    %875 = vmatpush1.msra.mxu0 %v864
    %876 = vmatprep.subr.mxu0 0.0
    %877 = vmatpush1.msra.mxu0 0.0
    %878 = vmatprep.subr.mxu0 0.0
    %879 = vmatpush1.msra.mxu0 0.0
    %880 = vmatprep.subr.mxu0 0.0
    %881 = vmatpush1.msra.mxu0 0.0
    %882 = vmatprep.subr.mxu0 0.0
    %883 = vmatpush1.msra.mxu0 0.0
    %884 = vmatprep.subr.mxu0 0.0
    %885 = vmatpush1.msra.mxu0 0.0
    %886 = vmatprep.subr.mxu0 0.0
    %887 = vmatpush1.msra.mxu0 0.0
    %888 = vmatprep.subr.mxu0 0.0
    %889 = vmatpush1.msra.mxu0 0.0
    %890 = vmatprep.subr.mxu0 0.0
    %891 = vmatpush1.msra.mxu0 0.0
    %892 = vmatprep.subr.mxu0 0.0
    %893 = vmatpush1.msra.mxu0 0.0
    %894 = vmatprep.subr.mxu0 0.0
    %895 = vmatpush1.msra.mxu0 0.0
    %896 = vmatprep.subr.mxu0 0.0
    %897 = vmatpush1.msra.mxu0 0.0
    %898 = vmatprep.subr.mxu0 0.0
    %899 = vmatpush1.msra.mxu0 0.0
    %900 = vmatprep.subr.mxu0 0.0
    %901 = vmatpush1.msra.mxu0 0.0
    %902 = vmatprep.subr.mxu0 0.0
    %903 = vmatpush1.msra.mxu0 0.0
    %904 = vmatprep.subr.mxu0 0.0
    %905 = vmatpush1.msra.mxu0 0.0
    %906 = vmatprep.subr.mxu0 0.0
    %907 = vmatpush1.msra.mxu0 0.0
    %908 = vmatprep.subr.mxu0 0.0
    %909 = vmatpush1.msra.mxu0 0.0
    %910 = vmatprep.subr.mxu0 0.0
    %911 = vmatpush1.msra.mxu0 0.0
    %912 = vmatprep.subr.mxu0 0.0
    %913 = vmatpush1.msra.mxu0 0.0
    %914 = vmatprep.subr.mxu0 0.0
    %915 = vmatpush1.msra.mxu0 0.0
    %916 = vmatprep.subr.mxu0 0.0
    %917 = vmatpush1.msra.mxu0 0.0
    %918 = vmatprep.subr.mxu0 0.0
    %919 = vmatpush1.msra.mxu0 0.0
    %920 = vmatprep.subr.mxu0 0.0
    %921 = vmatpush1.msra.mxu0 0.0
    %922 = vmatprep.subr.mxu0 0.0
    %923 = vmatpush1.msra.mxu0 0.0
    %924 = vmatprep.subr.mxu0 0.0
    %925 = vmatpush1.msra.mxu0 0.0
    %926 = vmatprep.subr.mxu0 0.0
    %927 = vmatpush1.msra.mxu0 0.0
    %928 = vmatprep.subr.mxu0 0.0
    %929 = vmatpush1.msra.mxu0 0.0
    %930 = vmatprep.subr.mxu0 0.0
    %931 = vmatpush1.msra.mxu0 0.0
    %932 = vmatprep.mubr.f32.mxu0 0.0
    %933 = vmatmul.mubr.f32.gmra.mrb[0].mxu0 %v866
    %v934 = vpop.f32.mrb[0].mxu0
    %v935 = vadd.f32 0.0, %v934
    %v936 = vpop.f32.mrb[0].mxu0
    %937 = vdwg.mxu0
    %v939 = vsel %vm244, %v776, 0
    %941 = vmatprep.subr.mxu0 0.0
    %942 = vmatpush1.msra.mxu0 %v779
    %943 = vmatprep.subr.mxu0 0.0
    %944 = vmatpush1.msra.mxu0 %v780
    %945 = vmatprep.subr.mxu0 0.0
    %946 = vmatpush1.msra.mxu0 %v781
    %947 = vmatprep.subr.mxu0 0.0
    %948 = vmatpush1.msra.mxu0 %v782
    %949 = vmatprep.subr.mxu0 0.0
    %950 = vmatpush1.msra.mxu0 0.0
    %951 = vmatprep.subr.mxu0 0.0
    %952 = vmatpush1.msra.mxu0 0.0
    %953 = vmatprep.subr.mxu0 0.0
    %954 = vmatpush1.msra.mxu0 0.0
    %955 = vmatprep.subr.mxu0 0.0
    %956 = vmatpush1.msra.mxu0 0.0
    %957 = vmatprep.subr.mxu0 0.0
    %958 = vmatpush1.msra.mxu0 0.0
    %959 = vmatprep.subr.mxu0 0.0
    %960 = vmatpush1.msra.mxu0 0.0
    %961 = vmatprep.subr.mxu0 0.0
    %962 = vmatpush1.msra.mxu0 0.0
    %963 = vmatprep.subr.mxu0 0.0
    %964 = vmatpush1.msra.mxu0 0.0
    %965 = vmatprep.subr.mxu0 0.0
    %966 = vmatpush1.msra.mxu0 0.0
    %967 = vmatprep.subr.mxu0 0.0
    %968 = vmatpush1.msra.mxu0 0.0
    %969 = vmatprep.subr.mxu0 0.0
    %970 = vmatpush1.msra.mxu0 0.0
    %971 = vmatprep.subr.mxu0 0.0
    %972 = vmatpush1.msra.mxu0 0.0
    %973 = vmatprep.subr.mxu0 0.0
    %974 = vmatpush1.msra.mxu0 0.0
    %975 = vmatprep.subr.mxu0 0.0
    %976 = vmatpush1.msra.mxu0 0.0
    %977 = vmatprep.subr.mxu0 0.0
    %978 = vmatpush1.msra.mxu0 0.0
    %979 = vmatprep.subr.mxu0 0.0
    %980 = vmatpush1.msra.mxu0 0.0
    %981 = vmatprep.subr.mxu0 0.0
    %982 = vmatpush1.msra.mxu0 0.0
    %983 = vmatprep.subr.mxu0 0.0
    %984 = vmatpush1.msra.mxu0 0.0
    %985 = vmatprep.subr.mxu0 0.0
    %986 = vmatpush1.msra.mxu0 0.0
    %987 = vmatprep.subr.mxu0 0.0
    %988 = vmatpush1.msra.mxu0 0.0
    %989 = vmatprep.subr.mxu0 0.0
    %990 = vmatpush1.msra.mxu0 0.0
    %991 = vmatprep.subr.mxu0 0.0
    %992 = vmatpush1.msra.mxu0 0.0
    %993 = vmatprep.subr.mxu0 0.0
    %994 = vmatpush1.msra.mxu0 0.0
    %995 = vmatprep.subr.mxu0 0.0
    %996 = vmatpush1.msra.mxu0 0.0
    %997 = vmatprep.subr.mxu0 0.0
    %998 = vmatpush1.msra.mxu0 0.0
    %999 = vmatprep.subr.mxu0 0.0
    %1000 = vmatpush1.msra.mxu0 0.0
    %1001 = vmatprep.subr.mxu0 0.0
    %1002 = vmatpush1.msra.mxu0 0.0
    %1003 = vmatprep.subr.mxu0 0.0
    %1004 = vmatpush1.msra.mxu0 0.0
    %1005 = vmatprep.mubr.f32.mxu0 0.0
    %1006 = vmatmul.mubr.f32.gmra.mrb[0].mxu0 %v939
    %v1007 = vpop.f32.mrb[0].mxu0
    %v1008 = vadd.f32 %v935, %v1007
    %v1009 = vpop.f32.mrb[0].mxu0
    %1010 = vdwg.mxu0
    %v1011 = vadd.s32 %v701, 2
    %vm1012 = vcmp.eq.s32.totalorder %v235, %v1011
    %v1013 = vsel %vm1012, 1, 0
    %v1014 = vcvt.s32.f32 %v1013
    %v1016 = vsel %vm705, %v1014, 0
    %1018 = vmatprep.subr.mxu0 0.0
    %1019 = vmatpush1.msra.mxu0 %v698
    %1020 = vmatprep.subr.mxu0 0.0
    %1021 = vmatpush1.msra.mxu0 0.0
    %1022 = vmatprep.subr.mxu0 0.0
    %1023 = vmatpush1.msra.mxu0 0.0
    %1024 = vmatprep.subr.mxu0 0.0
    %1025 = vmatpush1.msra.mxu0 0.0
    %1026 = vmatprep.subr.mxu0 0.0
    %1027 = vmatpush1.msra.mxu0 0.0
    %1028 = vmatprep.subr.mxu0 0.0
    %1029 = vmatpush1.msra.mxu0 0.0
    %1030 = vmatprep.subr.mxu0 0.0
    %1031 = vmatpush1.msra.mxu0 0.0
    %1032 = vmatprep.subr.mxu0 0.0
    %1033 = vmatpush1.msra.mxu0 0.0
    %1034 = vmatprep.subr.mxu0 0.0
    %1035 = vmatpush1.msra.mxu0 0.0
    %1036 = vmatprep.subr.mxu0 0.0
    %1037 = vmatpush1.msra.mxu0 0.0
    %1038 = vmatprep.subr.mxu0 0.0
    %1039 = vmatpush1.msra.mxu0 0.0
    %1040 = vmatprep.subr.mxu0 0.0
    %1041 = vmatpush1.msra.mxu0 0.0
    %1042 = vmatprep.subr.mxu0 0.0
    %1043 = vmatpush1.msra.mxu0 0.0
    %1044 = vmatprep.subr.mxu0 0.0
    %1045 = vmatpush1.msra.mxu0 0.0
    %1046 = vmatprep.subr.mxu0 0.0
    %1047 = vmatpush1.msra.mxu0 0.0
    %1048 = vmatprep.subr.mxu0 0.0
    %1049 = vmatpush1.msra.mxu0 0.0
    %1050 = vmatprep.subr.mxu0 0.0
    %1051 = vmatpush1.msra.mxu0 0.0
    %1052 = vmatprep.subr.mxu0 0.0
    %1053 = vmatpush1.msra.mxu0 0.0
    %1054 = vmatprep.subr.mxu0 0.0
    %1055 = vmatpush1.msra.mxu0 0.0
    %1056 = vmatprep.subr.mxu0 0.0
    %1057 = vmatpush1.msra.mxu0 0.0
    %1058 = vmatprep.subr.mxu0 0.0
    %1059 = vmatpush1.msra.mxu0 0.0
    %1060 = vmatprep.subr.mxu0 0.0
    %1061 = vmatpush1.msra.mxu0 0.0
    %1062 = vmatprep.subr.mxu0 0.0
    %1063 = vmatpush1.msra.mxu0 0.0
    %1064 = vmatprep.subr.mxu0 0.0
    %1065 = vmatpush1.msra.mxu0 0.0
    %1066 = vmatprep.subr.mxu0 0.0
    %1067 = vmatpush1.msra.mxu0 0.0
    %1068 = vmatprep.subr.mxu0 0.0
    %1069 = vmatpush1.msra.mxu0 0.0
    %1070 = vmatprep.subr.mxu0 0.0
    %1071 = vmatpush1.msra.mxu0 0.0
    %1072 = vmatprep.subr.mxu0 0.0
    %1073 = vmatpush1.msra.mxu0 0.0
    %1074 = vmatprep.subr.mxu0 0.0
    %1075 = vmatpush1.msra.mxu0 0.0
    %1076 = vmatprep.subr.mxu0 0.0
    %1077 = vmatpush1.msra.mxu0 0.0
    %1078 = vmatprep.subr.mxu0 0.0
    %1079 = vmatpush1.msra.mxu0 0.0
    %1080 = vmatprep.subr.mxu0 0.0
    %1081 = vmatpush1.msra.mxu0 0.0
    %1082 = vmatprep.mubr.f32.mxu0 0.0
    %1083 = vmatmul.mubr.f32.gmra.mrb[0].mxu0 %v1016
    %v1084 = vpop.f32.mrb[0].mxu0
    %v1085 = vadd.f32 0.0, %v1084
    %v1086 = vpop.f32.mrb[0].mxu0
    %1087 = vdwg.mxu0
    %s1088 = scalar_lea.vmem [#allocation2], 64
    %v1089 = vld [vmem:[%s1088] sm:$0xff]
    %v1090 = vld [vmem:[%s1088 + $0x8] sm:$0xff]
    %v1091 = vld [vmem:[%s1088 + $0x10] sm:$0xff]
    %v1092 = vld [vmem:[%s1088 + $0x18] sm:$0xff]
    %v1094 = vsel %vm244, %v1085, 0
    %1096 = vmatprep.subr.mxu0 0.0
    %1097 = vmatpush1.msra.mxu0 %v1089
    %1098 = vmatprep.subr.mxu0 0.0
    %1099 = vmatpush1.msra.mxu0 %v1090
    %1100 = vmatprep.subr.mxu0 0.0
    %1101 = vmatpush1.msra.mxu0 %v1091
    %1102 = vmatprep.subr.mxu0 0.0
    %1103 = vmatpush1.msra.mxu0 %v1092
    %1104 = vmatprep.subr.mxu0 0.0
    %1105 = vmatpush1.msra.mxu0 0.0
    %1106 = vmatprep.subr.mxu0 0.0
    %1107 = vmatpush1.msra.mxu0 0.0
    %1108 = vmatprep.subr.mxu0 0.0
    %1109 = vmatpush1.msra.mxu0 0.0
    %1110 = vmatprep.subr.mxu0 0.0
    %1111 = vmatpush1.msra.mxu0 0.0
    %1112 = vmatprep.subr.mxu0 0.0
    %1113 = vmatpush1.msra.mxu0 0.0
    %1114 = vmatprep.subr.mxu0 0.0
    %1115 = vmatpush1.msra.mxu0 0.0
    %1116 = vmatprep.subr.mxu0 0.0
    %1117 = vmatpush1.msra.mxu0 0.0
    %1118 = vmatprep.subr.mxu0 0.0
    %1119 = vmatpush1.msra.mxu0 0.0
    %1120 = vmatprep.subr.mxu0 0.0
    %1121 = vmatpush1.msra.mxu0 0.0
    %1122 = vmatprep.subr.mxu0 0.0
    %1123 = vmatpush1.msra.mxu0 0.0
    %1124 = vmatprep.subr.mxu0 0.0
    %1125 = vmatpush1.msra.mxu0 0.0
    %1126 = vmatprep.subr.mxu0 0.0
    %1127 = vmatpush1.msra.mxu0 0.0
    %1128 = vmatprep.subr.mxu0 0.0
    %1129 = vmatpush1.msra.mxu0 0.0
    %1130 = vmatprep.subr.mxu0 0.0
    %1131 = vmatpush1.msra.mxu0 0.0
    %1132 = vmatprep.subr.mxu0 0.0
    %1133 = vmatpush1.msra.mxu0 0.0
    %1134 = vmatprep.subr.mxu0 0.0
    %1135 = vmatpush1.msra.mxu0 0.0
    %1136 = vmatprep.subr.mxu0 0.0
    %1137 = vmatpush1.msra.mxu0 0.0
    %1138 = vmatprep.subr.mxu0 0.0
    %1139 = vmatpush1.msra.mxu0 0.0
    %1140 = vmatprep.subr.mxu0 0.0
    %1141 = vmatpush1.msra.mxu0 0.0
    %1142 = vmatprep.subr.mxu0 0.0
    %1143 = vmatpush1.msra.mxu0 0.0
    %1144 = vmatprep.subr.mxu0 0.0
    %1145 = vmatpush1.msra.mxu0 0.0
    %1146 = vmatprep.subr.mxu0 0.0
    %1147 = vmatpush1.msra.mxu0 0.0
    %1148 = vmatprep.subr.mxu0 0.0
    %1149 = vmatpush1.msra.mxu0 0.0
    %1150 = vmatprep.subr.mxu0 0.0
    %1151 = vmatpush1.msra.mxu0 0.0
    %1152 = vmatprep.subr.mxu0 0.0
    %1153 = vmatpush1.msra.mxu0 0.0
    %1154 = vmatprep.subr.mxu0 0.0
    %1155 = vmatpush1.msra.mxu0 0.0
    %1156 = vmatprep.subr.mxu0 0.0
    %1157 = vmatpush1.msra.mxu0 0.0
    %1158 = vmatprep.subr.mxu0 0.0
    %1159 = vmatpush1.msra.mxu0 0.0
    %1160 = vmatprep.mubr.f32.mxu0 0.0
    %1161 = vmatmul.mubr.f32.gmra.mrb[0].mxu0 %v1094
    %v1162 = vpop.f32.mrb[0].mxu0
    %v1163 = vadd.f32 0.0, %v1162
    %v1164 = vpop.f32.mrb[0].mxu0
    %1165 = vdwg.mxu0
    %v1166 = vadd.f32 %v1008, %v1163
    %v1167 = vadd.s32 %v701, 3
    %vm1168 = vcmp.eq.s32.totalorder %v235, %v1167
    %v1169 = vsel %vm1168, 1, 0
    %v1170 = vcvt.s32.f32 %v1169
    %v1172 = vsel %vm705, %v1170, 0
    %1174 = vmatprep.subr.mxu0 0.0
    %1175 = vmatpush1.msra.mxu0 %v698
    %1176 = vmatprep.subr.mxu0 0.0
    %1177 = vmatpush1.msra.mxu0 0.0
    %1178 = vmatprep.subr.mxu0 0.0
    %1179 = vmatpush1.msra.mxu0 0.0
    %1180 = vmatprep.subr.mxu0 0.0
    %1181 = vmatpush1.msra.mxu0 0.0
    %1182 = vmatprep.subr.mxu0 0.0
    %1183 = vmatpush1.msra.mxu0 0.0
    %1184 = vmatprep.subr.mxu0 0.0
    %1185 = vmatpush1.msra.mxu0 0.0
    %1186 = vmatprep.subr.mxu0 0.0
    %1187 = vmatpush1.msra.mxu0 0.0
    %1188 = vmatprep.subr.mxu0 0.0
    %1189 = vmatpush1.msra.mxu0 0.0
    %1190 = vmatprep.subr.mxu0 0.0
    %1191 = vmatpush1.msra.mxu0 0.0
    %1192 = vmatprep.subr.mxu0 0.0
    %1193 = vmatpush1.msra.mxu0 0.0
    %1194 = vmatprep.subr.mxu0 0.0
    %1195 = vmatpush1.msra.mxu0 0.0
    %1196 = vmatprep.subr.mxu0 0.0
    %1197 = vmatpush1.msra.mxu0 0.0
    %1198 = vmatprep.subr.mxu0 0.0
    %1199 = vmatpush1.msra.mxu0 0.0
    %1200 = vmatprep.subr.mxu0 0.0
    %1201 = vmatpush1.msra.mxu0 0.0
    %1202 = vmatprep.subr.mxu0 0.0
    %1203 = vmatpush1.msra.mxu0 0.0
    %1204 = vmatprep.subr.mxu0 0.0
    %1205 = vmatpush1.msra.mxu0 0.0
    %1206 = vmatprep.subr.mxu0 0.0
    %1207 = vmatpush1.msra.mxu0 0.0
    %1208 = vmatprep.subr.mxu0 0.0
    %1209 = vmatpush1.msra.mxu0 0.0
    %1210 = vmatprep.subr.mxu0 0.0
    %1211 = vmatpush1.msra.mxu0 0.0
    %1212 = vmatprep.subr.mxu0 0.0
    %1213 = vmatpush1.msra.mxu0 0.0
    %1214 = vmatprep.subr.mxu0 0.0
    %1215 = vmatpush1.msra.mxu0 0.0
    %1216 = vmatprep.subr.mxu0 0.0
    %1217 = vmatpush1.msra.mxu0 0.0
    %1218 = vmatprep.subr.mxu0 0.0
    %1219 = vmatpush1.msra.mxu0 0.0
    %1220 = vmatprep.subr.mxu0 0.0
    %1221 = vmatpush1.msra.mxu0 0.0
    %1222 = vmatprep.subr.mxu0 0.0
    %1223 = vmatpush1.msra.mxu0 0.0
    %1224 = vmatprep.subr.mxu0 0.0
    %1225 = vmatpush1.msra.mxu0 0.0
    %1226 = vmatprep.subr.mxu0 0.0
    %1227 = vmatpush1.msra.mxu0 0.0
    %1228 = vmatprep.subr.mxu0 0.0
    %1229 = vmatpush1.msra.mxu0 0.0
    %1230 = vmatprep.subr.mxu0 0.0
    %1231 = vmatpush1.msra.mxu0 0.0
    %1232 = vmatprep.subr.mxu0 0.0
    %1233 = vmatpush1.msra.mxu0 0.0
    %1234 = vmatprep.subr.mxu0 0.0
    %1235 = vmatpush1.msra.mxu0 0.0
    %1236 = vmatprep.subr.mxu0 0.0
    %1237 = vmatpush1.msra.mxu0 0.0
    %1238 = vmatprep.mubr.f32.mxu0 0.0
    %1239 = vmatmul.mubr.f32.gmra.mrb[0].mxu0 %v1172
    %v1240 = vpop.f32.mrb[0].mxu0
    %v1241 = vadd.f32 0.0, %v1240
    %v1242 = vpop.f32.mrb[0].mxu0
    %1243 = vdwg.mxu0
    %s1244 = scalar_lea.vmem [#allocation2], 96
    %v1245 = vld [vmem:[%s1244] sm:$0xff]
    %v1246 = vld [vmem:[%s1244 + $0x8] sm:$0xff]
    %v1247 = vld [vmem:[%s1244 + $0x10] sm:$0xff]
    %v1248 = vld [vmem:[%s1244 + $0x18] sm:$0xff]
    %v1250 = vsel %vm244, %v1241, 0
    %1252 = vmatprep.subr.mxu0 0.0
    %1253 = vmatpush1.msra.mxu0 %v1245
    %1254 = vmatprep.subr.mxu0 0.0
    %1255 = vmatpush1.msra.mxu0 %v1246
    %1256 = vmatprep.subr.mxu0 0.0
    %1257 = vmatpush1.msra.mxu0 %v1247
    %1258 = vmatprep.subr.mxu0 0.0
    %1259 = vmatpush1.msra.mxu0 %v1248
    %1260 = vmatprep.subr.mxu0 0.0
    %1261 = vmatpush1.msra.mxu0 0.0
    %1262 = vmatprep.subr.mxu0 0.0
    %1263 = vmatpush1.msra.mxu0 0.0
    %1264 = vmatprep.subr.mxu0 0.0
    %1265 = vmatpush1.msra.mxu0 0.0
    %1266 = vmatprep.subr.mxu0 0.0
    %1267 = vmatpush1.msra.mxu0 0.0
    %1268 = vmatprep.subr.mxu0 0.0
    %1269 = vmatpush1.msra.mxu0 0.0
    %1270 = vmatprep.subr.mxu0 0.0
    %1271 = vmatpush1.msra.mxu0 0.0
    %1272 = vmatprep.subr.mxu0 0.0
    %1273 = vmatpush1.msra.mxu0 0.0
    %1274 = vmatprep.subr.mxu0 0.0
    %1275 = vmatpush1.msra.mxu0 0.0
    %1276 = vmatprep.subr.mxu0 0.0
    %1277 = vmatpush1.msra.mxu0 0.0
    %1278 = vmatprep.subr.mxu0 0.0
    %1279 = vmatpush1.msra.mxu0 0.0
    %1280 = vmatprep.subr.mxu0 0.0
    %1281 = vmatpush1.msra.mxu0 0.0
    %1282 = vmatprep.subr.mxu0 0.0
    %1283 = vmatpush1.msra.mxu0 0.0
    %1284 = vmatprep.subr.mxu0 0.0
    %1285 = vmatpush1.msra.mxu0 0.0
    %1286 = vmatprep.subr.mxu0 0.0
    %1287 = vmatpush1.msra.mxu0 0.0
    %1288 = vmatprep.subr.mxu0 0.0
    %1289 = vmatpush1.msra.mxu0 0.0
    %1290 = vmatprep.subr.mxu0 0.0
    %1291 = vmatpush1.msra.mxu0 0.0
    %1292 = vmatprep.subr.mxu0 0.0
    %1293 = vmatpush1.msra.mxu0 0.0
    %1294 = vmatprep.subr.mxu0 0.0
    %1295 = vmatpush1.msra.mxu0 0.0
    %1296 = vmatprep.subr.mxu0 0.0
    %1297 = vmatpush1.msra.mxu0 0.0
    %1298 = vmatprep.subr.mxu0 0.0
    %1299 = vmatpush1.msra.mxu0 0.0
    %1300 = vmatprep.subr.mxu0 0.0
    %1301 = vmatpush1.msra.mxu0 0.0
    %1302 = vmatprep.subr.mxu0 0.0
    %1303 = vmatpush1.msra.mxu0 0.0
    %1304 = vmatprep.subr.mxu0 0.0
    %1305 = vmatpush1.msra.mxu0 0.0
    %1306 = vmatprep.subr.mxu0 0.0
    %1307 = vmatpush1.msra.mxu0 0.0
    %1308 = vmatprep.subr.mxu0 0.0
    %1309 = vmatpush1.msra.mxu0 0.0
    %1310 = vmatprep.subr.mxu0 0.0
    %1311 = vmatpush1.msra.mxu0 0.0
    %1312 = vmatprep.subr.mxu0 0.0
    %1313 = vmatpush1.msra.mxu0 0.0
    %1314 = vmatprep.subr.mxu0 0.0
    %1315 = vmatpush1.msra.mxu0 0.0
    %1316 = vmatprep.mubr.f32.mxu0 0.0
    %1317 = vmatmul.mubr.f32.gmra.mrb[0].mxu0 %v1250
    %v1318 = vpop.f32.mrb[0].mxu0
    %v1319 = vadd.f32 0.0, %v1318
    %v1320 = vpop.f32.mrb[0].mxu0
    %1321 = vdwg.mxu0
    %v1322 = vadd.f32 %v1166, %v1319
    %v1323 = vld [vmem:[%s6] sm:$0x1]
    %v1325 = vlaneseq
    %v1326 = vshrl.u32 %v1325, 7
    %v1327 = vsub.s32 0, %v1326
    %v1328 = vrot.slane %v1323, %v1327
    %v1330 = vadd.f32 %v1322, %v1328
    %v1331 = vmax.f32 %v1330, 0.0
    %v1332 = vld [vmem:[#allocation5] sm:$0xff]
    %v1333 = vld [vmem:[#allocation5 + $0x8] sm:$0xff]
    %v1334 = vld [vmem:[#allocation5 + $0x10] sm:$0xff]
    %v1335 = vld [vmem:[#allocation5 + $0x18] sm:$0xff]
    %v1336 = vld [vmem:[#allocation5 + $0x20] sm:$0xff]
    %v1337 = vld [vmem:[#allocation5 + $0x28] sm:$0xff]
    %v1338 = vld [vmem:[#allocation5 + $0x30] sm:$0xff]
    %v1339 = vld [vmem:[#allocation5 + $0x38] sm:$0xff]
    %v1340 = vld [vmem:[#allocation5 + $0x40] sm:$0xff]
    %v1341 = vld [vmem:[#allocation5 + $0x48] sm:$0xff]
    %v1342 = vld [vmem:[#allocation5 + $0x50] sm:$0xff]
    %v1343 = vld [vmem:[#allocation5 + $0x58] sm:$0xff]
    %v1344 = vld [vmem:[#allocation5 + $0x60] sm:$0xff]
    %v1345 = vld [vmem:[#allocation5 + $0x68] sm:$0xff]
    %v1346 = vld [vmem:[#allocation5 + $0x70] sm:$0xff]
    %v1347 = vld [vmem:[#allocation5 + $0x78] sm:$0xff]
    %v1348 = vld [vmem:[%s8] sm:$0x1]
    %v1350 = vlaneseq
    %v1351 = vshrl.u32 %v1350, 7
    %v1352 = vsub.s32 0, %v1351
    %v1353 = vrot.slane %v1348, %v1352
    %1355 = vmatprep.subr.mxu0 0.0
    %1356 = vmatpush1.msra.mxu0 %v1332
    %1357 = vmatprep.subr.mxu0 0.0
    %1358 = vmatpush1.msra.mxu0 %v1333
    %1359 = vmatprep.subr.mxu0 0.0
    %1360 = vmatpush1.msra.mxu0 %v1334
    %1361 = vmatprep.subr.mxu0 0.0
    %1362 = vmatpush1.msra.mxu0 %v1335
    %1363 = vmatprep.subr.mxu0 0.0
    %1364 = vmatpush1.msra.mxu0 %v1336
    %1365 = vmatprep.subr.mxu0 0.0
    %1366 = vmatpush1.msra.mxu0 %v1337
    %1367 = vmatprep.subr.mxu0 0.0
    %1368 = vmatpush1.msra.mxu0 %v1338
    %1369 = vmatprep.subr.mxu0 0.0
    %1370 = vmatpush1.msra.mxu0 %v1339
    %1371 = vmatprep.subr.mxu0 0.0
    %1372 = vmatpush1.msra.mxu0 %v1340
    %1373 = vmatprep.subr.mxu0 0.0
    %1374 = vmatpush1.msra.mxu0 %v1341
    %1375 = vmatprep.subr.mxu0 0.0
    %1376 = vmatpush1.msra.mxu0 %v1342
    %1377 = vmatprep.subr.mxu0 0.0
    %1378 = vmatpush1.msra.mxu0 %v1343
    %1379 = vmatprep.subr.mxu0 0.0
    %1380 = vmatpush1.msra.mxu0 %v1344
    %1381 = vmatprep.subr.mxu0 0.0
    %1382 = vmatpush1.msra.mxu0 %v1345
    %1383 = vmatprep.subr.mxu0 0.0
    %1384 = vmatpush1.msra.mxu0 %v1346
    %1385 = vmatprep.subr.mxu0 0.0
    %1386 = vmatpush1.msra.mxu0 %v1347
    %1387 = vmatprep.subr.mxu0 0.0
    %1388 = vmatpush1.msra.mxu0 0.0
    %1389 = vmatprep.subr.mxu0 0.0
    %1390 = vmatpush1.msra.mxu0 0.0
    %1391 = vmatprep.subr.mxu0 0.0
    %1392 = vmatpush1.msra.mxu0 0.0
    %1393 = vmatprep.subr.mxu0 0.0
    %1394 = vmatpush1.msra.mxu0 0.0
    %1395 = vmatprep.subr.mxu0 0.0
    %1396 = vmatpush1.msra.mxu0 0.0
    %1397 = vmatprep.subr.mxu0 0.0
    %1398 = vmatpush1.msra.mxu0 0.0
    %1399 = vmatprep.subr.mxu0 0.0
    %1400 = vmatpush1.msra.mxu0 0.0
    %1401 = vmatprep.subr.mxu0 0.0
    %1402 = vmatpush1.msra.mxu0 0.0
    %1403 = vmatprep.subr.mxu0 0.0
    %1404 = vmatpush1.msra.mxu0 0.0
    %1405 = vmatprep.subr.mxu0 0.0
    %1406 = vmatpush1.msra.mxu0 0.0
    %1407 = vmatprep.subr.mxu0 0.0
    %1408 = vmatpush1.msra.mxu0 0.0
    %1409 = vmatprep.subr.mxu0 0.0
    %1410 = vmatpush1.msra.mxu0 0.0
    %1411 = vmatprep.subr.mxu0 0.0
    %1412 = vmatpush1.msra.mxu0 0.0
    %1413 = vmatprep.subr.mxu0 0.0
    %1414 = vmatpush1.msra.mxu0 0.0
    %1415 = vmatprep.subr.mxu0 0.0
    %1416 = vmatpush1.msra.mxu0 0.0
    %1417 = vmatprep.subr.mxu0 0.0
    %1418 = vmatpush1.msra.mxu0 0.0
    %1419 = vmatprep.mubr.f32.mxu0 0.0
    %1420 = vmatmul.mubr.f32.gmra.mrb[0].mxu0 %v1331
    %v1421 = vpop.f32.mrb[0].mxu0
    %v1422 = vadd.f32 %v1353, %v1421
    %v1423 = vpop.f32.mrb[0].mxu0
    %1424 = vdwg.mxu0
    %1425 = vst [vmem:[#allocation7] sm:$0x3] %v1422
    // Predicated region
    $region46: #{simple_cnn_forward.1} parent=1 // pred_check
      _
    $region47: #{simple_cnn_forward.1} parent=1 // pred_check_branch
      %1427 = sbr.rel (0) target = $region49
    $region48: #{simple_cnn_forward.1} parent=1 // pred_region
      %s1429 = ssub.s32 32, 32
      %1430 = vsyncadd [#allocation4], %s1429
      %s1432 = sshll.u32 [#allocation7], 4
      %s1433 = int_to_ptr.vmem [resolvable:$true] %s1432
      %1435 = dma.vmem_to_hbm [thread:$0]  %s1433, 32, %s9, [#allocation4]
    $region49: #{simple_cnn_forward.1} parent=1 // pred_fallthru
      _
    // Predicated region
    $region50: #{simple_cnn_forward.1} parent=1 // pred_check
      _
    $region51: #{simple_cnn_forward.1} parent=1 // pred_check_branch
      %1437 = sbr.rel (0) target = $region53
    $region52: #{simple_cnn_forward.1} parent=1 // pred_region
      %1438 = dma.done [#allocation4], 32
    $region53: #{simple_cnn_forward.1} parent=1 // pred_fallthru
      _
    %1439 = vsyncpa [#allocation3], 1
    %1440 = vsyncpa [#allocation6], 1
    %1441 = vsyncpa [#allocation4], 1

</llo_original>
